<compile_context>
chip_gen: v6e
topology: v6e:2x2x1
jax: 0.10.0
libtpu: 0.0.40
codegen_flags: <defaults>
</compile_context>

<pallas_src>
import jax
import jax.numpy as jnp
from jax.experimental import pallas as pl
from jax.experimental.pallas import tpu as pltpu

IN_F = 3 * 32 * 32       # 3072
HID_F = 3 * 16 * 16      # 768
OUT_F = 10
OUT_PAD = 128            # lane-dense padded logits width
EPS = 1e-5
TK = 1536                # fc1 K-chunk streamed through the grid (3072 / 1536 = 2 steps)


def _mlp_kernel(x_ref, w1_ref, qscale_ref, b1_ref, w2_ref, b2_ref,
                logits_ref, pred_ref, acc_ref):
    k = pl.program_id(0)

    @pl.when(k == 0)
    def _init():
        acc_ref[...] = jnp.zeros_like(acc_ref)

    # Dequantize this int8 w1 K-chunk on the VPU (i8 -> f32 -> bf16; the per-output-channel
    # quant scale is applied once in the epilogue, not per chunk) and accumulate on the MXU
    # with f32 accumulation.  The cast work hides under the next chunk's DMA.
    w_chunk = w1_ref[...].astype(jnp.float32).astype(jnp.bfloat16)
    acc_ref[...] += jnp.dot(x_ref[...], w_chunk, preferred_element_type=jnp.float32)

    @pl.when(k == pl.num_programs(0) - 1)
    def _finalize():
        # int8 dequant scale + folded BN bias + ReLU.
        h = jnp.maximum(acc_ref[...] * qscale_ref[...] + b1_ref[...], 0.0)
        logits = jnp.dot(h.astype(jnp.bfloat16), w2_ref[...],
                         preferred_element_type=jnp.float32) + b2_ref[...]
        logits_ref[...] = logits

        # Fused argmax over the real (non-padded) lanes.  Padded lanes MUST be masked to
        # -inf (zero-padded lanes would win whenever all real logits are negative).
        col = jax.lax.broadcasted_iota(jnp.int32, logits.shape, 1)
        masked = jnp.where(col < OUT_F, logits, -jnp.inf)
        row_max = jnp.max(masked, axis=1, keepdims=True)
        # first index achieving the max (matches torch/jnp argmax tie-breaking)
        idx = jnp.where(masked == row_max, col, OUT_PAD).astype(jnp.float32)
        pred_ref[...] = jnp.min(idx, axis=1, keepdims=True).astype(jnp.int32)


def prepare_params(params):
    """Fold eval-mode BatchNorm into fc1, int8-quantize w1 per output channel,
    keep fc2 bf16 and lane-pad it to 128 columns."""
    w1, b1, gamma, beta, rmean, rvar, w2, b2 = params
    bn_scale = gamma * jax.lax.rsqrt(rvar + EPS)                  # (1, HID_F)
    w1_folded = w1 * bn_scale                                     # (IN_F, HID_F) f32
    b1_folded = (b1 - rmean) * bn_scale + beta                    # (1, HID_F)  f32

    # per-output-channel symmetric int8 quantization of the BN-folded fc1 weight
    absmax = jnp.max(jnp.abs(w1_folded), axis=0, keepdims=True)   # (1, HID_F)
    qscale = absmax / 127.0
    qscale = jnp.where(qscale == 0.0, 1.0, qscale)
    w1_q = jnp.clip(jnp.round(w1_folded / qscale), -127.0, 127.0).astype(jnp.int8)

    w2p = jnp.zeros((HID_F, OUT_PAD), jnp.bfloat16).at[:, :OUT_F].set(
        w2.astype(jnp.bfloat16))                                  # (HID_F, 128) bf16
    b2p = jnp.zeros((1, OUT_PAD), jnp.float32).at[:, :OUT_F].set(b2)
    return w1_q, qscale, b1_folded, w2p, b2p


@jax.jit
def mlp_forward(x, prepared):
    """Returns (logits, pred).  fc1 (int8 dequant) + BN-folded bias + ReLU + fc2 +
    masked argmax all run in one Pallas kernel; pred needs no post-processing."""
    B = x.shape[0]
    w1_q, qscale, b1f, w2p, b2p = prepared
    x_bf16 = x.astype(jnp.bfloat16)
    n_k = IN_F // TK

    flops = 2 * B * (IN_F * HID_F + HID_F * OUT_PAD)
    bytes_accessed = (w1_q.size                       # int8 fc1 weights (dominant)
                      + x_bf16.size * 2               # bf16 activations
                      + w2p.size * 2                  # bf16 fc2 weights
                      + (qscale.size + b1f.size + b2p.size) * 4
                      + B * OUT_PAD * 4 + B * 4)      # outputs

    logits_padded, pred2d = pl.pallas_call(
        _mlp_kernel,
        out_shape=(jax.ShapeDtypeStruct((B, OUT_PAD), jnp.float32),
                   jax.ShapeDtypeStruct((B, 1), jnp.int32)),
        grid_spec=pltpu.PrefetchScalarGridSpec(
            num_scalar_prefetch=0,
            grid=(n_k,),
            in_specs=[
                pl.BlockSpec((B, TK), lambda k: (0, k)),            # x K-chunk (bf16)
                pl.BlockSpec((TK, HID_F), lambda k: (k, 0)),        # w1 K-chunk (int8)
                pl.BlockSpec((1, HID_F), lambda k: (0, 0)),         # int8 dequant scale
                pl.BlockSpec((1, HID_F), lambda k: (0, 0)),         # BN-folded b1 (f32)
                pl.BlockSpec((HID_F, OUT_PAD), lambda k: (0, 0)),   # padded w2 (bf16)
                pl.BlockSpec((1, OUT_PAD), lambda k: (0, 0)),       # padded b2 (f32)
            ],
            out_specs=[
                pl.BlockSpec((B, OUT_PAD), lambda k: (0, 0)),       # logits (resident)
                pl.BlockSpec((B, 1), lambda k: (0, 0)),             # pred (resident)
            ],
            scratch_shapes=[pltpu.VMEM((B, HID_F), jnp.float32)],   # fc1 accumulator
        ),
        compiler_params=pltpu.CompilerParams(
            dimension_semantics=("arbitrary",),        # K reduction: must NOT be parallel
            vmem_limit_bytes=32 * 1024 * 1024,
        ),
        cost_estimate=pl.CostEstimate(flops=flops, transcendentals=0,
                                      bytes_accessed=bytes_accessed),
    )(x_bf16, w1_q, qscale, b1f, w2p, b2p)

    logits = logits_padded[:, :OUT_F]   # only needed for inspection; pred is already final
    pred = pred2d[:, 0]
    return logits, pred


def init_params(key):
    k1, k2, k3, k4, k5, k6 = jax.random.split(key, 6)
    # Linear layers: uniform(-1/sqrt(fan_in), 1/sqrt(fan_in)) like PyTorch defaults.
    lim1 = 1.0 / jnp.sqrt(jnp.float32(IN_F))
    lim2 = 1.0 / jnp.sqrt(jnp.float32(HID_F))
    w1 = jax.random.uniform(k1, (IN_F, HID_F), jnp.float32, -lim1, lim1)
    b1 = jax.random.uniform(k2, (1, HID_F), jnp.float32, -lim1, lim1)
    w2 = jax.random.uniform(k3, (HID_F, OUT_F), jnp.float32, -lim2, lim2)
    b2 = jax.random.uniform(k4, (1, OUT_F), jnp.float32, -lim2, lim2)
    # Custom BatchNorm1d: weight/bias ~ randn; running stats are zeros/ones buffers.
    gamma = jax.random.normal(k5, (1, HID_F), jnp.float32)
    beta = jax.random.normal(k6, (1, HID_F), jnp.float32)
    rmean = jnp.zeros((1, HID_F), jnp.float32)
    rvar = jnp.ones((1, HID_F), jnp.float32)
    return (w1, b1, gamma, beta, rmean, rvar, w2, b2)


if __name__ == "__main__":
    key = jax.random.PRNGKey(0)
    pkey, xkey = jax.random.split(key)
    params = init_params(pkey)
    prepared = prepare_params(params)

    B = 8
    x = jax.random.normal(xkey, (B, IN_F), jnp.float32)

    logits, pred = mlp_forward(x, prepared)
    jax.block_until_ready((logits, pred))

    # --- reference 1: plain-JAX replica of the exact kernel math (int8 w1, bf16 MXU) ---
    w1_q, qscale, b1f, w2p, b2p = prepared
    xb = x.astype(jnp.bfloat16)
    wb = w1_q.astype(jnp.float32).astype(jnp.bfloat16)
    acc = jnp.dot(xb, wb, preferred_element_type=jnp.float32)
    h_ref = jnp.maximum(acc * qscale + b1f, 0.0)
    logits_ref = jnp.dot(h_ref.astype(jnp.bfloat16), w2p,
                         preferred_element_type=jnp.float32) + b2p
    logits_ref = logits_ref[:, :OUT_F]
    pred_ref = jnp.argmax(logits_ref, axis=1)

    assert jnp.allclose(logits, logits_ref, atol=2e-3, rtol=2e-3)
    # pred check only where the reference top-2 margin is well above numerical noise
    top2 = jnp.sort(logits_ref, axis=1)[:, -2:]
    safe = (top2[:, 1] - top2[:, 0]) > 1e-2
    assert bool(jnp.all(jnp.where(safe, pred == pred_ref, True)))

    # --- reference 2: full-precision eval-mode forward of the original module (loose
    #     accuracy check on the int8/bf16 quantization drift) ---
    w1, b1, gamma, beta, rmean, rvar, w2, b2 = params
    bn_scale = gamma * jax.lax.rsqrt(rvar + EPS)
    z = jnp.dot(x, w1) + b1
    h_fp = jnp.maximum(bn_scale * (z - rmean) + beta, 0.0)
    logits_fp = jnp.dot(h_fp, w2) + b2
    assert jnp.allclose(logits, logits_fp, atol=8e-2)

    print("KERNEL_OK")
</pallas_src>

<mosaic_0001>
module attributes {stable_mosaic.version = 11 : i64} {
  func.func @_mlp_kernel(%arg0: i32, %arg1: memref<8x1536xbf16, #tpu.memory_space<vmem>>, %arg2: memref<1536x768xi8, #tpu.memory_space<vmem>>, %arg3: memref<1x768xf32, #tpu.memory_space<vmem>>, %arg4: memref<1x768xf32, #tpu.memory_space<vmem>>, %arg5: memref<768x128xbf16, #tpu.memory_space<vmem>>, %arg6: memref<1x128xf32, #tpu.memory_space<vmem>>, %arg7: memref<8x128xf32, #tpu.memory_space<vmem>>, %arg8: memref<8x1xi32, #tpu.memory_space<vmem>>, %arg9: memref<8x768xf32, #tpu.memory_space<vmem>>) attributes {dimension_semantics = [#tpu.dimension_semantics<arbitrary>], iteration_bounds = array<i64: 2>, scalar_prefetch = 0 : i64, scratch_operands = 1 : i64, tpu.core_type = #tpu.core_type<tc>, window_params = [{transform_indices = @transform_0, window_bounds = array<i64: 8, 1536>}, {transform_indices = @transform_1, window_bounds = array<i64: 1536, 768>}, {pipeline_mode = #tpu.pipeline_mode<synchronous>, transform_indices = @transform_2, window_bounds = array<i64: 1, 768>}, {pipeline_mode = #tpu.pipeline_mode<synchronous>, transform_indices = @transform_3, window_bounds = array<i64: 1, 768>}, {pipeline_mode = #tpu.pipeline_mode<synchronous>, transform_indices = @transform_4, window_bounds = array<i64: 768, 128>}, {pipeline_mode = #tpu.pipeline_mode<synchronous>, transform_indices = @transform_5, window_bounds = array<i64: 1, 128>}, {pipeline_mode = #tpu.pipeline_mode<synchronous>, transform_indices = @transform_6, window_bounds = array<i64: 8, 128>}, {pipeline_mode = #tpu.pipeline_mode<synchronous>, transform_indices = @transform_7, window_bounds = array<i64: 8, 1>}]} {
    %c0_i32 = arith.constant 0 : i32
    %0 = arith.cmpi eq, %arg0, %c0_i32 : i32
    %1 = arith.extui %0 : i1 to i32
    %c0_i32_0 = arith.constant 0 : i32
    %2 = arith.cmpi ne, %1, %c0_i32_0 : i32
    scf.if %2 {
      %cst_9 = arith.constant 0.000000e+00 : f32
      %14 = vector.broadcast %cst_9 : f32 to vector<8x768xf32>
      %c0_10 = arith.constant 0 : index
      %c0_11 = arith.constant 0 : index
      %15 = vector.load %arg9[%c0_10, %c0_11] : memref<8x768xf32, #tpu.memory_space<vmem>>, vector<8x768xf32>
      tpu.vector_store %arg9[%c0_10, %c0_11], %14 {strides = array<i32>} : memref<8x768xf32, #tpu.memory_space<vmem>>, vector<8x768xf32>,
    } else {
    }
    %c0 = arith.constant 0 : index
    %c0_1 = arith.constant 0 : index
    %3 = vector.load %arg2[%c0, %c0_1] : memref<1536x768xi8, #tpu.memory_space<vmem>>, vector<1536x768xi8>
    %4 = arith.sitofp %3 : vector<1536x768xi8> to vector<1536x768xf32>
    %5 = arith.truncf %4 : vector<1536x768xf32> to vector<1536x768xbf16>
    %c0_2 = arith.constant 0 : index
    %c0_3 = arith.constant 0 : index
    %6 = vector.load %arg9[%c0_2, %c0_3] : memref<8x768xf32, #tpu.memory_space<vmem>>, vector<8x768xf32>
    %c0_4 = arith.constant 0 : index
    %c0_5 = arith.constant 0 : index
    %7 = vector.load %arg1[%c0_4, %c0_5] : memref<8x1536xbf16, #tpu.memory_space<vmem>>, vector<8x1536xbf16>
    %cst = arith.constant dense<0.000000e+00> : vector<8x768xf32>
    %8 = tpu.matmul %7, %5, %cst {dimension_numbers = #tpu.dot_dimension_numbers<[1], [0], [0], [1], [0, 0, 1, 1], [], []>} : vector<8x1536xbf16>, vector<1536x768xbf16>, vector<8x768xf32> -> vector<8x768xf32>
    %9 = arith.addf %6, %8 : vector<8x768xf32>
    %c0_6 = arith.constant 0 : index
    %c0_7 = arith.constant 0 : index
    %10 = vector.load %arg9[%c0_6, %c0_7] : memref<8x768xf32, #tpu.memory_space<vmem>>, vector<8x768xf32>
    tpu.vector_store %arg9[%c0_6, %c0_7], %9 {strides = array<i32>} : memref<8x768xf32, #tpu.memory_space<vmem>>, vector<8x768xf32>,
    %c1_i32 = arith.constant 1 : i32
    %11 = arith.cmpi eq, %arg0, %c1_i32 : i32
    %12 = arith.extui %11 : i1 to i32
    %c0_i32_8 = arith.constant 0 : i32
    %13 = arith.cmpi ne, %12, %c0_i32_8 : i32
    scf.if %13 {
      %c0_9 = arith.constant 0 : index
      %c0_10 = arith.constant 0 : index
      %14 = vector.load %arg9[%c0_9, %c0_10] : memref<8x768xf32, #tpu.memory_space<vmem>>, vector<8x768xf32>
      %c0_11 = arith.constant 0 : index
      %c0_12 = arith.constant 0 : index
      %15 = vector.load %arg3[%c0_11, %c0_12] : memref<1x768xf32, #tpu.memory_space<vmem>>, vector<1x768xf32>
      %16 = vector.broadcast %15 : vector<1x768xf32> to vector<8x768xf32>
      %17 = arith.mulf %14, %16 : vector<8x768xf32>
      %c0_13 = arith.constant 0 : index
      %c0_14 = arith.constant 0 : index
      %18 = vector.load %arg4[%c0_13, %c0_14] : memref<1x768xf32, #tpu.memory_space<vmem>>, vector<1x768xf32>
      %19 = vector.broadcast %18 : vector<1x768xf32> to vector<8x768xf32>
      %20 = arith.addf %17, %19 : vector<8x768xf32>
      %cst_15 = arith.constant 0.000000e+00 : f32
      %21 = vector.broadcast %cst_15 : f32 to vector<8x768xf32>
      %22 = arith.maximumf %20, %21 : vector<8x768xf32>
      %23 = arith.truncf %22 : vector<8x768xf32> to vector<8x768xbf16>
      %c0_16 = arith.constant 0 : index
      %c0_17 = arith.constant 0 : index
      %24 = vector.load %arg5[%c0_16, %c0_17] : memref<768x128xbf16, #tpu.memory_space<vmem>>, vector<768x128xbf16>
      %cst_18 = arith.constant dense<0.000000e+00> : vector<8x128xf32>
      %25 = tpu.matmul %23, %24, %cst_18 {dimension_numbers = #tpu.dot_dimension_numbers<[1], [0], [0], [1], [0, 0, 1, 1], [], []>} : vector<8x768xbf16>, vector<768x128xbf16>, vector<8x128xf32> -> vector<8x128xf32>
      %c0_19 = arith.constant 0 : index
      %c0_20 = arith.constant 0 : index
      %26 = vector.load %arg6[%c0_19, %c0_20] : memref<1x128xf32, #tpu.memory_space<vmem>>, vector<1x128xf32>
      %27 = vector.broadcast %26 : vector<1x128xf32> to vector<8x128xf32>
      %28 = arith.addf %25, %27 : vector<8x128xf32>
      %c0_21 = arith.constant 0 : index
      %c0_22 = arith.constant 0 : index
      %29 = vector.load %arg7[%c0_21, %c0_22] : memref<8x128xf32, #tpu.memory_space<vmem>>, vector<8x128xf32>
      tpu.vector_store %arg7[%c0_21, %c0_22], %28 {strides = array<i32>} : memref<8x128xf32, #tpu.memory_space<vmem>>, vector<8x128xf32>,
      %30 = tpu.iota {dimensions = array<i32: 1>} : vector<8x128xi32>
      %c10_i32 = arith.constant 10 : i32
      %31 = vector.broadcast %c10_i32 : i32 to vector<8x128xi32>
      %32 = arith.cmpi slt, %30, %31 : vector<8x128xi32>
      %cst_23 = arith.constant 0xFF800000 : f32
      %33 = vector.broadcast %cst_23 : f32 to vector<8x128xf32>
      %34 = arith.select %32, %28, %33 : vector<8x128xi1>, vector<8x128xf32>
      %cst_24 = arith.constant dense<0xFF800000> : vector<8xf32>
      %35 = vector.multi_reduction <maximumf>, %34, %cst_24 [1] : vector<8x128xf32> to vector<8xf32>
      %36 = vector.shape_cast %35 : vector<8xf32> to vector<8x1xf32>
      %37 = vector.broadcast %36 : vector<8x1xf32> to vector<8x128xf32>
      %38 = arith.cmpf oeq, %34, %37 : vector<8x128xf32>
      %c128_i32 = arith.constant 128 : i32
      %39 = vector.broadcast %c128_i32 : i32 to vector<8x128xi32>
      %40 = arith.select %38, %30, %39 : vector<8x128xi1>, vector<8x128xi32>
      %41 = arith.sitofp %40 : vector<8x128xi32> to vector<8x128xf32>
      %cst_25 = arith.constant dense<0x7F800000> : vector<8xf32>
      %42 = vector.multi_reduction <minimumf>, %41, %cst_25 [1] : vector<8x128xf32> to vector<8xf32>
      %43 = vector.shape_cast %42 : vector<8xf32> to vector<8x1xf32>
      %44 = arith.fptosi %43 : vector<8x1xf32> to vector<8x1xi32>
      %c0_26 = arith.constant 0 : index
      %c0_27 = arith.constant 0 : index
      %45 = vector.load %arg8[%c0_26, %c0_27] : memref<8x1xi32, #tpu.memory_space<vmem>>, vector<8x1xi32>
      tpu.vector_store %arg8[%c0_26, %c0_27], %44 {strides = array<i32>} : memref<8x1xi32, #tpu.memory_space<vmem>>, vector<8x1xi32>,
    } else {
    }
    return
  }
  func.func @transform_0(%arg0: i32) -> (i32, i32) {
    %c0_i32 = arith.constant 0 : i32
    %c0_i32_0 = arith.constant 0 : i32
    return %c0_i32, %arg0 : i32, i32
  }
  func.func @transform_1(%arg0: i32) -> (i32, i32) {
    %c0_i32 = arith.constant 0 : i32
    %c0_i32_0 = arith.constant 0 : i32
    return %arg0, %c0_i32 : i32, i32
  }
  func.func @transform_2(%arg0: i32) -> (i32, i32) {
    %c0_i32 = arith.constant 0 : i32
    %c0_i32_0 = arith.constant 0 : i32
    %c0_i32_1 = arith.constant 0 : i32
    return %c0_i32, %c0_i32_0 : i32, i32
  }
  func.func @transform_3(%arg0: i32) -> (i32, i32) {
    %c0_i32 = arith.constant 0 : i32
    %c0_i32_0 = arith.constant 0 : i32
    %c0_i32_1 = arith.constant 0 : i32
    return %c0_i32, %c0_i32_0 : i32, i32
  }
  func.func @transform_4(%arg0: i32) -> (i32, i32) {
    %c0_i32 = arith.constant 0 : i32
    %c0_i32_0 = arith.constant 0 : i32
    %c0_i32_1 = arith.constant 0 : i32
    return %c0_i32, %c0_i32_0 : i32, i32
  }
  func.func @transform_5(%arg0: i32) -> (i32, i32) {
    %c0_i32 = arith.constant 0 : i32
    %c0_i32_0 = arith.constant 0 : i32
    %c0_i32_1 = arith.constant 0 : i32
    return %c0_i32, %c0_i32_0 : i32, i32
  }
  func.func @transform_6(%arg0: i32) -> (i32, i32) {
    %c0_i32 = arith.constant 0 : i32
    %c0_i32_0 = arith.constant 0 : i32
    %c0_i32_1 = arith.constant 0 : i32
    return %c0_i32, %c0_i32_0 : i32, i32
  }
  func.func @transform_7(%arg0: i32) -> (i32, i32) {
    %c0_i32 = arith.constant 0 : i32
    %c0_i32_0 = arith.constant 0 : i32
    %c0_i32_1 = arith.constant 0 : i32
    return %c0_i32, %c0_i32_0 : i32, i32
  }
}

</mosaic_0001>

<llo_original>
// kernel: mlp_forward.1
$region0: #{mlp_forward.1}
  #allocation0 [shape = 'u32[]', space=smem, size = 0x4, offset = 0x4, fixed_abs, tag = 'smem constant byte address 0x4 - core index']
  #allocation1 [shape = 'u32[144,128]{1,0:T(1,128)}', space=vmem, size = 0x12000, scoped, tag = 'internal scratch']
  #allocation2 [shape = 'f32[8,768]{1,0:T(8,128)}', space=vmem, size = 0x6000, scoped, tag = 'scratch operand']
  %s0 = inlined_call_operand.vmem [shape: bf16[8,3072], index: 0, kind: input, shape index: {}]
  %s1 = inlined_call_operand.hbm [shape: s8[3072,768], index: 1, kind: input, shape index: {}]
  %s2 = inlined_call_operand.hbm [shape: f32[1,768], index: 2, kind: input, shape index: {}]
  %s3 = inlined_call_operand.hbm [shape: f32[1,768], index: 3, kind: input, shape index: {}]
  %s4 = inlined_call_operand.hbm [shape: bf16[768,128], index: 4, kind: input, shape index: {}]
  %s5 = inlined_call_operand.hbm [shape: f32[1,128], index: 5, kind: input, shape index: {}]
  %s6 = inlined_call_operand.hbm [shape: f32[8,128], index: 6, kind: output, shape index: {0}]
  %s7 = inlined_call_operand.vmem [shape: s32[8,1], index: 7, kind: output, shape index: {1}]
  %8 = xla_tuple %s6, %s7
  %s9 = sld [smem:[#allocation0]]
  $region93: #{mlp_forward.1} parent=0
    _
  %s11 = ssub.s32 1, %s9
  %s12 = scalar_select 0, %s11, %s9
  $region1: #{mlp_forward.1} parent=0
    #allocation3 [shape = 'u8[2359296]{0}', space=vmem, size = 0x240000, scoped, tag = 'input window, operand 1']
    #allocation4 [shape = 's32[2]{0}', space=sflag, size = 0x8, scoped, tag = 'scoped memory for mlp_forward.1']
    #allocation5 [shape = 's32[2]{0}', space=sflag, size = 0x8, scoped, tag = 'scoped memory for mlp_forward.1']
    #allocation6 [shape = 'u8[3072]{0}', space=vmem, size = 0xc00, scoped, tag = 'input window, operand 2, single buffered']
    #allocation7 [shape = 's32[1]{0}', space=sflag, size = 0x4, scoped, tag = 'scoped memory for mlp_forward.1']
    #allocation8 [shape = 'u8[3072]{0}', space=vmem, size = 0xc00, scoped, tag = 'input window, operand 3, single buffered']
    #allocation9 [shape = 'u8[196608]{0}', space=vmem, size = 0x30000, scoped, tag = 'input window, operand 4, single buffered']
    #allocation10 [shape = 's32[1]{0}', space=sflag, size = 0x4, scoped, tag = 'scoped memory for mlp_forward.1']
    #allocation11 [shape = 'u8[512]{0}', space=vmem, size = 0x400, scoped, tag = 'input window, operand 5, single buffered']
    #allocation12 [shape = 'u8[4096]{0}', space=vmem, size = 0x1000, scoped, tag = 'output window, operand 0, single buffered']
    %13 = vsyncpa [#allocation4], 0
    %s14 = scalar_lea.sflag [#allocation4], 1
    %15 = vsyncpa %s14, 0
    %16 = vsyncpa [#allocation7], 0
    %17 = vsyncpa [#allocation10], 0
    %18 = vsyncpa [#allocation5], 0
    loop: start=0, step=1, limit=4
    $region2: #{mlp_forward.1} parent=1 // loop_pre_header
      _
    $region3: #{mlp_forward.1} parent=1 // loop_header
      %s20 = sphi 0, %s24
      %p21 = scmp.ge.s32.totalorder %s20, 4
      %s30 = sphi 0, %s32
      %s33 = sphi 0, %s30
      %s34 = sphi 0, %s33
      %s50 = sphi 0, %s34
      %s56 = sphi 0, %s58
      %s59 = sphi 0, %s56
      %s60 = sphi 0, %s59
      %s76 = sphi 0, %s60
      %s80 = sphi 0, %s80
      %s82 = sphi 0, %s80
      %s83 = sphi 0, %s82
      %s97 = sphi 0, %s83
      %s101 = sphi 0, %s101
      %s103 = sphi 0, %s101
      %s104 = sphi 0, %s103
      %s118 = sphi 0, %s104
      %s122 = sphi 0, %s122
      %s124 = sphi 0, %s122
      %s125 = sphi 0, %s124
      %s139 = sphi 0, %s125
      %s143 = sphi 0, %s143
      %s145 = sphi 0, %s143
      %s146 = sphi 0, %s145
      %s160 = sphi 0, %s146
      %s164 = sphi 0, %s164
      %s166 = sphi 0, %s164
      %s167 = sphi 0, %s166
      %s181 = sphi 0, %s167
      %s185 = sphi 0, %s185
      %s187 = sphi 0, %s185
      %s188 = sphi 0, %s187
      %s202 = sphi 0, %s188
    $region4: #{mlp_forward.1} parent=1 // loop_header_branch
      %23 = sbr.rel (%p21) target = $region8
    $region5: #{mlp_forward.1} parent=1 // loop_body
      %s25 = ssub.s32 %s20, 1
      %s26 = ssub.s32 %s20, 2
      %s27 = sadd.s32 %s20, 1
      %s28 = ssub.s32 %s20, %s27
      %p29 = scmp.eq.s32.totalorder %s28, 0
      %s31 = sadd.s32 %s30, 1
      %s32 = scalar_select %p29, %s30, %s31
      %p35 = pneg %p29
      %p36 = scmp.eq.s32.totalorder %s20, 1
      %p37 = por %p35, %p36
      %p38 = scmp.ne.s32.totalorder %s30, %s33
      %p39 = scmp.eq.s32.totalorder %s20, 0
      %p40 = por %p38, %p39
      %p41 = scmp.ne.s32.totalorder %s30, %s33
      %p42 = scmp.eq.s32.totalorder %s25, 1
      %p43 = por %p41, %p42
      %p44 = scmp.ne.s32.totalorder %s33, %s34
      %p45 = scmp.eq.s32.totalorder %s25, 0
      %p46 = por %p44, %p45
      %p47 = scmp.ne.s32.totalorder %s33, %s34
      %p48 = scmp.eq.s32.totalorder %s26, 1
      %p49 = por %p47, %p48
      %p51 = scmp.ne.s32.totalorder %s34, %s50
      %p52 = scmp.eq.s32.totalorder %s26, 0
      %p53 = por %p51, %p52
      %s54 = ssub.s32 %s20, %s27
      %p55 = scmp.eq.s32.totalorder %s54, 0
      %s57 = sadd.s32 %s56, 1
      %s58 = scalar_select %p55, %s56, %s57
      %p61 = pneg %p55
      %p62 = scmp.eq.s32.totalorder %s20, 1
      %p63 = por %p61, %p62
      %p64 = scmp.ne.s32.totalorder %s56, %s59
      %p65 = scmp.eq.s32.totalorder %s20, 0
      %p66 = por %p64, %p65
      %p67 = scmp.ne.s32.totalorder %s56, %s59
      %p68 = scmp.eq.s32.totalorder %s25, 1
      %p69 = por %p67, %p68
      %p70 = scmp.ne.s32.totalorder %s59, %s60
      %p71 = scmp.eq.s32.totalorder %s25, 0
      %p72 = por %p70, %p71
      %p73 = scmp.ne.s32.totalorder %s59, %s60
      %p74 = scmp.eq.s32.totalorder %s26, 1
      %p75 = por %p73, %p74
      %p77 = scmp.ne.s32.totalorder %s60, %s76
      %p78 = scmp.eq.s32.totalorder %s26, 0
      %p79 = por %p77, %p78
      %s81 = sadd.s32 %s80, 1
      %p84 = scmp.eq.s32.totalorder %s20, 1
      %p85 = scmp.ne.s32.totalorder %s80, %s82
      %p86 = scmp.eq.s32.totalorder %s20, 0
      %p87 = por %p85, %p86
      %p88 = scmp.ne.s32.totalorder %s80, %s82
      %p89 = scmp.eq.s32.totalorder %s25, 1
      %p90 = por %p88, %p89
      %p91 = scmp.ne.s32.totalorder %s82, %s83
      %p92 = scmp.eq.s32.totalorder %s25, 0
      %p93 = por %p91, %p92
      %p94 = scmp.ne.s32.totalorder %s82, %s83
      %p95 = scmp.eq.s32.totalorder %s26, 1
      %p96 = por %p94, %p95
      %p98 = scmp.ne.s32.totalorder %s83, %s97
      %p99 = scmp.eq.s32.totalorder %s26, 0
      %p100 = por %p98, %p99
      %s102 = sadd.s32 %s101, 1
      %p105 = scmp.eq.s32.totalorder %s20, 1
      %p106 = scmp.ne.s32.totalorder %s101, %s103
      %p107 = scmp.eq.s32.totalorder %s20, 0
      %p108 = por %p106, %p107
      %p109 = scmp.ne.s32.totalorder %s101, %s103
      %p110 = scmp.eq.s32.totalorder %s25, 1
      %p111 = por %p109, %p110
      %p112 = scmp.ne.s32.totalorder %s103, %s104
      %p113 = scmp.eq.s32.totalorder %s25, 0
      %p114 = por %p112, %p113
      %p115 = scmp.ne.s32.totalorder %s103, %s104
      %p116 = scmp.eq.s32.totalorder %s26, 1
      %p117 = por %p115, %p116
      %p119 = scmp.ne.s32.totalorder %s104, %s118
      %p120 = scmp.eq.s32.totalorder %s26, 0
      %p121 = por %p119, %p120
      %s123 = sadd.s32 %s122, 1
      %p126 = scmp.eq.s32.totalorder %s20, 1
      %p127 = scmp.ne.s32.totalorder %s122, %s124
      %p128 = scmp.eq.s32.totalorder %s20, 0
      %p129 = por %p127, %p128
      %p130 = scmp.ne.s32.totalorder %s122, %s124
      %p131 = scmp.eq.s32.totalorder %s25, 1
      %p132 = por %p130, %p131
      %p133 = scmp.ne.s32.totalorder %s124, %s125
      %p134 = scmp.eq.s32.totalorder %s25, 0
      %p135 = por %p133, %p134
      %p136 = scmp.ne.s32.totalorder %s124, %s125
      %p137 = scmp.eq.s32.totalorder %s26, 1
      %p138 = por %p136, %p137
      %p140 = scmp.ne.s32.totalorder %s125, %s139
      %p141 = scmp.eq.s32.totalorder %s26, 0
      %p142 = por %p140, %p141
      %s144 = sadd.s32 %s143, 1
      %p147 = scmp.eq.s32.totalorder %s20, 1
      %p148 = scmp.ne.s32.totalorder %s143, %s145
      %p149 = scmp.eq.s32.totalorder %s20, 0
      %p150 = por %p148, %p149
      %p151 = scmp.ne.s32.totalorder %s143, %s145
      %p152 = scmp.eq.s32.totalorder %s25, 1
      %p153 = por %p151, %p152
      %p154 = scmp.ne.s32.totalorder %s145, %s146
      %p155 = scmp.eq.s32.totalorder %s25, 0
      %p156 = por %p154, %p155
      %p157 = scmp.ne.s32.totalorder %s145, %s146
      %p158 = scmp.eq.s32.totalorder %s26, 1
      %p159 = por %p157, %p158
      %p161 = scmp.ne.s32.totalorder %s146, %s160
      %p162 = scmp.eq.s32.totalorder %s26, 0
      %p163 = por %p161, %p162
      %s165 = sadd.s32 %s164, 1
      %p168 = scmp.eq.s32.totalorder %s20, 1
      %p169 = scmp.ne.s32.totalorder %s164, %s166
      %p170 = scmp.eq.s32.totalorder %s20, 0
      %p171 = por %p169, %p170
      %p172 = scmp.ne.s32.totalorder %s164, %s166
      %p173 = scmp.eq.s32.totalorder %s25, 1
      %p174 = por %p172, %p173
      %p175 = scmp.ne.s32.totalorder %s166, %s167
      %p176 = scmp.eq.s32.totalorder %s25, 0
      %p177 = por %p175, %p176
      %p178 = scmp.ne.s32.totalorder %s166, %s167
      %p179 = scmp.eq.s32.totalorder %s26, 1
      %p180 = por %p178, %p179
      %p182 = scmp.ne.s32.totalorder %s167, %s181
      %p183 = scmp.eq.s32.totalorder %s26, 0
      %p184 = por %p182, %p183
      %s186 = sadd.s32 %s185, 1
      %p189 = scmp.eq.s32.totalorder %s20, 1
      %p190 = scmp.ne.s32.totalorder %s185, %s187
      %p191 = scmp.eq.s32.totalorder %s20, 0
      %p192 = por %p190, %p191
      %p193 = scmp.ne.s32.totalorder %s185, %s187
      %p194 = scmp.eq.s32.totalorder %s25, 1
      %p195 = por %p193, %p194
      %p196 = scmp.ne.s32.totalorder %s187, %s188
      %p197 = scmp.eq.s32.totalorder %s25, 0
      %p198 = por %p196, %p197
      %p199 = scmp.ne.s32.totalorder %s187, %s188
      %p200 = scmp.eq.s32.totalorder %s26, 1
      %p201 = por %p199, %p200
      %p203 = scmp.ne.s32.totalorder %s188, %s202
      %p204 = scmp.eq.s32.totalorder %s26, 0
      %p205 = por %p203, %p204
      %p206 = scmp.le.s32.totalorder 1, %s20
      %p207 = scmp.lt.s32.totalorder %s20, 3
      %p208 = pnand %p206, %p207
      %p209 = pneg %p208
      // Predicated region
      $region9: #{mlp_forward.1} parent=5 // pred_check
        _
      $region10: #{mlp_forward.1} parent=5 // pred_check_branch
        %211 = sbr.rel (%p208) target = $region12
      $region11: #{mlp_forward.1} parent=5 // pred_region
        %s212 = ssub.s32 %s20, 1
        // Predicated region
        $region13: #{mlp_forward.1} parent=11 // pred_check
          %p213 = pneg %p93
        $region14: #{mlp_forward.1} parent=11 // pred_check_branch
          %215 = sbr.rel (%p213) target = $region16
        $region15: #{mlp_forward.1} parent=11 // pred_region
          %s217 = ssub.s32 96, 96
          %218 = vsyncadd [#allocation7], %s217
          %s220 = sshll.u32 [#allocation6], 4
          %s221 = int_to_ptr.vmem [resolvable:$true] %s220
          %223 = dma.hbm_to_vmem [thread:$0]  %s2, 96, %s221, [#allocation7]
        $region16: #{mlp_forward.1} parent=11 // pred_fallthru
          _
        // Predicated region
        $region17: #{mlp_forward.1} parent=11 // pred_check
          %p224 = pneg %p114
        $region18: #{mlp_forward.1} parent=11 // pred_check_branch
          %226 = sbr.rel (%p224) target = $region20
        $region19: #{mlp_forward.1} parent=11 // pred_region
          %s228 = ssub.s32 96, 96
          %229 = vsyncadd [#allocation7], %s228
          %s231 = sshll.u32 [#allocation8], 4
          %s232 = int_to_ptr.vmem [resolvable:$true] %s231
          %234 = dma.hbm_to_vmem [thread:$0]  %s3, 96, %s232, [#allocation7]
        $region20: #{mlp_forward.1} parent=11 // pred_fallthru
          _
        // Predicated region
        $region21: #{mlp_forward.1} parent=11 // pred_check
          %p235 = pneg %p135
        $region22: #{mlp_forward.1} parent=11 // pred_check_branch
          %237 = sbr.rel (%p235) target = $region24
        $region23: #{mlp_forward.1} parent=11 // pred_region
          %s239 = ssub.s32 6144, 6144
          %240 = vsyncadd [#allocation10], %s239
          %s241 = sshll.u32 [#allocation9], 4
          %s242 = int_to_ptr.vmem [resolvable:$true] %s241
          %247 = dma.hbm_to_vmem [thread:$0]  %s4, 6144, %s242, [#allocation10], 64, 64, 4
        $region24: #{mlp_forward.1} parent=11 // pred_fallthru
          _
        // Predicated region
        $region25: #{mlp_forward.1} parent=11 // pred_check
          %p248 = pneg %p156
        $region26: #{mlp_forward.1} parent=11 // pred_check_branch
          %250 = sbr.rel (%p248) target = $region28
        $region27: #{mlp_forward.1} parent=11 // pred_region
          %s252 = ssub.s32 16, 16
          %253 = vsyncadd [#allocation10], %s252
          %s255 = sshll.u32 [#allocation11], 4
          %s256 = int_to_ptr.vmem [resolvable:$true] %s255
          %258 = dma.hbm_to_vmem [thread:$0]  %s5, 16, %s256, [#allocation10]
        $region28: #{mlp_forward.1} parent=11 // pred_fallthru
          _
      $region12: #{mlp_forward.1} parent=5 // pred_fallthru
        _
      %p259 = scmp.lt.s32.totalorder %s20, 2
      // Predicated region
      $region29: #{mlp_forward.1} parent=5 // pred_check
        %p260 = pneg %p259
      $region30: #{mlp_forward.1} parent=5 // pred_check_branch
        %262 = sbr.rel (%p260) target = $region32
      $region31: #{mlp_forward.1} parent=5 // pred_region
        // Predicated region
        $region33: #{mlp_forward.1} parent=31 // pred_check
          %p263 = pneg %p40
        $region34: #{mlp_forward.1} parent=31 // pred_check_branch
          %265 = sbr.rel (%p263) target = $region36
        $region35: #{mlp_forward.1} parent=31 // pred_region
          %s266 = smul.u32 12, %s20
          %p267 = scmp.lt.s32.totalorder %s266, 23
          %s268 = scalar_select %p267, %s266, 23
          %s269 = smul.addr %s268, 4
          %s270 = scalar_lea.vmem %s0, %s269
          %s271 = smul.u32 12, %s20
        $region36: #{mlp_forward.1} parent=31 // pred_fallthru
          _
        // Predicated region
        $region37: #{mlp_forward.1} parent=31 // pred_check
          %p272 = pneg %p66
        $region38: #{mlp_forward.1} parent=31 // pred_check_branch
          %274 = sbr.rel (%p272) target = $region40
        $region39: #{mlp_forward.1} parent=31 // pred_region
          %s275 = sand.u32 %s56, 1
          %s276 = scalar_lea.sflag [#allocation4], %s275
          %s277 = sand.u32 %s56, 1
          %s278 = smul.addr %s277, 2304
          %s279 = scalar_lea.vmem [#allocation3], %s278
          %s280 = smul.u32 48, %s20
          %s282 = ssub.s32 36864, 36864
          %283 = vsyncadd %s276, %s282
          %s284 = smul.addr %s280, 6
          %s285 = smul.addr %s284, 128
          %s286 = scalar_lea.hbm %s1, %s285
          %s287 = sshll.u32 %s279, 4
          %s288 = int_to_ptr.vmem [resolvable:$true] %s287
          %293 = dma.hbm_to_vmem [thread:$0]  %s286, 36864, %s288, %s276, 768, 768, 48
        $region40: #{mlp_forward.1} parent=31 // pred_fallthru
          _
      $region32: #{mlp_forward.1} parent=5 // pred_fallthru
        _
      %p294 = scmp.le.s32.totalorder 1, %s20
      %p295 = scmp.lt.s32.totalorder %s20, 3
      %p296 = pnand %p294, %p295
      %p297 = pneg %p296
      // Predicated region
      $region41: #{mlp_forward.1} parent=5 // pred_check
        _
      $region42: #{mlp_forward.1} parent=5 // pred_check_branch
        %299 = sbr.rel (%p296) target = $region44
      $region43: #{mlp_forward.1} parent=5 // pred_region
        %s300 = ssub.s32 %s20, 1
        %s301 = sand.u32 %s59, 1
        %s302 = scalar_lea.sflag [#allocation4], %s301
        %s303 = sand.u32 %s59, 1
        %s304 = smul.addr %s303, 2304
        %s305 = scalar_lea.vmem [#allocation3], %s304
        // Predicated region
        $region45: #{mlp_forward.1} parent=43 // pred_check
          %p306 = pneg %p72
        $region46: #{mlp_forward.1} parent=43 // pred_check_branch
          %308 = sbr.rel (%p306) target = $region48
        $region47: #{mlp_forward.1} parent=43 // pred_region
          %309 = dma.done %s302, 36864
        $region48: #{mlp_forward.1} parent=43 // pred_fallthru
          _
        // Predicated region
        $region49: #{mlp_forward.1} parent=43 // pred_check
          %p310 = pneg %p93
        $region50: #{mlp_forward.1} parent=43 // pred_check_branch
          %312 = sbr.rel (%p310) target = $region52
        $region51: #{mlp_forward.1} parent=43 // pred_region
          %313 = dma.done [#allocation7], 96
        $region52: #{mlp_forward.1} parent=43 // pred_fallthru
          _
        // Predicated region
        $region53: #{mlp_forward.1} parent=43 // pred_check
          %p314 = pneg %p114
        $region54: #{mlp_forward.1} parent=43 // pred_check_branch
          %316 = sbr.rel (%p314) target = $region56
        $region55: #{mlp_forward.1} parent=43 // pred_region
          %317 = dma.done [#allocation7], 96
        $region56: #{mlp_forward.1} parent=43 // pred_fallthru
          _
        // Predicated region
        $region57: #{mlp_forward.1} parent=43 // pred_check
          %p318 = pneg %p135
        $region58: #{mlp_forward.1} parent=43 // pred_check_branch
          %320 = sbr.rel (%p318) target = $region60
        $region59: #{mlp_forward.1} parent=43 // pred_region
          %321 = dma.done [#allocation10], 6144
        $region60: #{mlp_forward.1} parent=43 // pred_fallthru
          _
        // Predicated region
        $region61: #{mlp_forward.1} parent=43 // pred_check
          %p322 = pneg %p156
        $region62: #{mlp_forward.1} parent=43 // pred_check_branch
          %324 = sbr.rel (%p322) target = $region64
        $region63: #{mlp_forward.1} parent=43 // pred_region
          %325 = dma.done [#allocation10], 16
        $region64: #{mlp_forward.1} parent=43 // pred_fallthru
          _
        %s326 = smul.u32 12, %s25
        %p327 = scmp.lt.s32.totalorder %s326, 23
        %s328 = scalar_select %p327, %s326, 23
        %s329 = smul.addr %s328, 4
        %s330 = scalar_lea.vmem %s0, %s329
        %p331 = pneg %p46
        %p332 = pneg %p43
        %s333 = sand.u32 %s59, 1
        %s334 = scalar_lea.sflag [#allocation4], %s333
        %s335 = sand.u32 %s59, 1
        %s336 = smul.addr %s335, 2304
        %s337 = scalar_lea.vmem [#allocation3], %s336
        %p338 = pneg %p72
        %p339 = pneg %p69
        %p340 = pneg %p93
        %p341 = pneg %p90
        %p342 = pneg %p114
        %p343 = pneg %p111
        %p344 = pneg %p135
        %p345 = pneg %p132
        %p346 = pneg %p156
        %p347 = pneg %p153
        %p348 = pneg %p177
        %p349 = pneg %p174
        %p350 = pneg %p198
        %p351 = pneg %p195
        %s352 = smul.u32 12, %s25
        %p353 = scmp.lt.s32.totalorder %s352, 23
        %s354 = scalar_select %p353, %s352, 23
        %s355 = smul.addr %s354, 4
        %s356 = scalar_lea.vmem %s0, %s355
        %s357 = smul.u32 12, %s25
        %s358 = smul.u32 48, %s25
        %p360 = scmp.eq.s32.totalorder %s25, 0
        // Predicated region
        $region65: #{mlp_forward.1} parent=43 // pred_check
          %p361 = pneg %p360
        $region66: #{mlp_forward.1} parent=43 // pred_check_branch
          %363 = sbr.rel (%p361) target = $region68
        $region67: #{mlp_forward.1} parent=43 // pred_region
          %364 = vst [vmem:[#allocation2] sm:$0xff] 0.0
          %365 = vst [vmem:[#allocation2 + $0x8] sm:$0xff] 0.0
          %366 = vst [vmem:[#allocation2 + $0x10] sm:$0xff] 0.0
          %367 = vst [vmem:[#allocation2 + $0x18] sm:$0xff] 0.0
          %368 = vst [vmem:[#allocation2 + $0x20] sm:$0xff] 0.0
          %369 = vst [vmem:[#allocation2 + $0x28] sm:$0xff] 0.0
        $region68: #{mlp_forward.1} parent=43 // pred_fallthru
          _
        %v370 = vld [vmem:[%s305] sm:$0xff]
        %v371 = vld [vmem:[%s305 + $0x8] sm:$0xff]
        %v372 = vld [vmem:[%s305 + $0x10] sm:$0xff]
        %v373 = vld [vmem:[%s305 + $0x18] sm:$0xff]
        %v374 = vld [vmem:[%s305 + $0x20] sm:$0xff]
        %v375 = vld [vmem:[%s305 + $0x28] sm:$0xff]
        %v376 = vld [vmem:[%s305 + $0x30] sm:$0xff]
        %v377 = vld [vmem:[%s305 + $0x38] sm:$0xff]
        %v378 = vld [vmem:[%s305 + $0x40] sm:$0xff]
        %v379 = vld [vmem:[%s305 + $0x48] sm:$0xff]
        %v380 = vld [vmem:[%s305 + $0x50] sm:$0xff]
        %v381 = vld [vmem:[%s305 + $0x58] sm:$0xff]
        %v382 = vld [vmem:[%s305 + $0x60] sm:$0xff]
        %v383 = vld [vmem:[%s305 + $0x68] sm:$0xff]
        %v384 = vld [vmem:[%s305 + $0x70] sm:$0xff]
        %v385 = vld [vmem:[%s305 + $0x78] sm:$0xff]
        %v386 = vld [vmem:[%s305 + $0x80] sm:$0xff]
        %v387 = vld [vmem:[%s305 + $0x88] sm:$0xff]
        %v388 = vld [vmem:[%s305 + $0x90] sm:$0xff]
        %v389 = vld [vmem:[%s305 + $0x98] sm:$0xff]
        %v390 = vld [vmem:[%s305 + $0xa0] sm:$0xff]
        %v391 = vld [vmem:[%s305 + $0xa8] sm:$0xff]
        %v392 = vld [vmem:[%s305 + $0xb0] sm:$0xff]
        %v393 = vld [vmem:[%s305 + $0xb8] sm:$0xff]
        %v394 = vld [vmem:[%s305 + $0xc0] sm:$0xff]
        %v395 = vld [vmem:[%s305 + $0xc8] sm:$0xff]
        %v396 = vld [vmem:[%s305 + $0xd0] sm:$0xff]
        %v397 = vld [vmem:[%s305 + $0xd8] sm:$0xff]
        %v398 = vld [vmem:[%s305 + $0xe0] sm:$0xff]
        %v399 = vld [vmem:[%s305 + $0xe8] sm:$0xff]
        %v400 = vld [vmem:[%s305 + $0xf0] sm:$0xff]
        %v401 = vld [vmem:[%s305 + $0xf8] sm:$0xff]
        %v402 = vld [vmem:[%s305 + $0x100] sm:$0xff]
        %v403 = vld [vmem:[%s305 + $0x108] sm:$0xff]
        %v404 = vld [vmem:[%s305 + $0x110] sm:$0xff]
        %v405 = vld [vmem:[%s305 + $0x118] sm:$0xff]
        %v406 = vld [vmem:[%s305 + $0x120] sm:$0xff]
        %v407 = vld [vmem:[%s305 + $0x128] sm:$0xff]
        %v408 = vld [vmem:[%s305 + $0x130] sm:$0xff]
        %v409 = vld [vmem:[%s305 + $0x138] sm:$0xff]
        %v410 = vld [vmem:[%s305 + $0x140] sm:$0xff]
        %v411 = vld [vmem:[%s305 + $0x148] sm:$0xff]
        %v412 = vld [vmem:[%s305 + $0x150] sm:$0xff]
        %v413 = vld [vmem:[%s305 + $0x158] sm:$0xff]
        %v414 = vld [vmem:[%s305 + $0x160] sm:$0xff]
        %v415 = vld [vmem:[%s305 + $0x168] sm:$0xff]
        %v416 = vld [vmem:[%s305 + $0x170] sm:$0xff]
        %v417 = vld [vmem:[%s305 + $0x178] sm:$0xff]
        %v418 = vld [vmem:[%s305 + $0x180] sm:$0xff]
        %v419 = vld [vmem:[%s305 + $0x188] sm:$0xff]
        %v420 = vld [vmem:[%s305 + $0x190] sm:$0xff]
        %v421 = vld [vmem:[%s305 + $0x198] sm:$0xff]
        %v422 = vld [vmem:[%s305 + $0x1a0] sm:$0xff]
        %v423 = vld [vmem:[%s305 + $0x1a8] sm:$0xff]
        %v424 = vld [vmem:[%s305 + $0x1b0] sm:$0xff]
        %v425 = vld [vmem:[%s305 + $0x1b8] sm:$0xff]
        %v426 = vld [vmem:[%s305 + $0x1c0] sm:$0xff]
        %v427 = vld [vmem:[%s305 + $0x1c8] sm:$0xff]
        %v428 = vld [vmem:[%s305 + $0x1d0] sm:$0xff]
        %v429 = vld [vmem:[%s305 + $0x1d8] sm:$0xff]
        %v430 = vld [vmem:[%s305 + $0x1e0] sm:$0xff]
        %v431 = vld [vmem:[%s305 + $0x1e8] sm:$0xff]
        %v432 = vld [vmem:[%s305 + $0x1f0] sm:$0xff]
        %v433 = vld [vmem:[%s305 + $0x1f8] sm:$0xff]
        %v434 = vld [vmem:[%s305 + $0x200] sm:$0xff]
        %v435 = vld [vmem:[%s305 + $0x208] sm:$0xff]
        %v436 = vld [vmem:[%s305 + $0x210] sm:$0xff]
        %v437 = vld [vmem:[%s305 + $0x218] sm:$0xff]
        %v438 = vld [vmem:[%s305 + $0x220] sm:$0xff]
        %v439 = vld [vmem:[%s305 + $0x228] sm:$0xff]
        %v440 = vld [vmem:[%s305 + $0x230] sm:$0xff]
        %v441 = vld [vmem:[%s305 + $0x238] sm:$0xff]
        %v442 = vld [vmem:[%s305 + $0x240] sm:$0xff]
        %v443 = vld [vmem:[%s305 + $0x248] sm:$0xff]
        %v444 = vld [vmem:[%s305 + $0x250] sm:$0xff]
        %v445 = vld [vmem:[%s305 + $0x258] sm:$0xff]
        %v446 = vld [vmem:[%s305 + $0x260] sm:$0xff]
        %v447 = vld [vmem:[%s305 + $0x268] sm:$0xff]
        %v448 = vld [vmem:[%s305 + $0x270] sm:$0xff]
        %v449 = vld [vmem:[%s305 + $0x278] sm:$0xff]
        %v450 = vld [vmem:[%s305 + $0x280] sm:$0xff]
        %v451 = vld [vmem:[%s305 + $0x288] sm:$0xff]
        %v452 = vld [vmem:[%s305 + $0x290] sm:$0xff]
        %v453 = vld [vmem:[%s305 + $0x298] sm:$0xff]
        %v454 = vld [vmem:[%s305 + $0x2a0] sm:$0xff]
        %v455 = vld [vmem:[%s305 + $0x2a8] sm:$0xff]
        %v456 = vld [vmem:[%s305 + $0x2b0] sm:$0xff]
        %v457 = vld [vmem:[%s305 + $0x2b8] sm:$0xff]
        %v458 = vld [vmem:[%s305 + $0x2c0] sm:$0xff]
        %v459 = vld [vmem:[%s305 + $0x2c8] sm:$0xff]
        %v460 = vld [vmem:[%s305 + $0x2d0] sm:$0xff]
        %v461 = vld [vmem:[%s305 + $0x2d8] sm:$0xff]
        %v462 = vld [vmem:[%s305 + $0x2e0] sm:$0xff]
        %v463 = vld [vmem:[%s305 + $0x2e8] sm:$0xff]
        %v464 = vld [vmem:[%s305 + $0x2f0] sm:$0xff]
        %v465 = vld [vmem:[%s305 + $0x2f8] sm:$0xff]
        %v466 = vld [vmem:[%s305 + $0x300] sm:$0xff]
        %v467 = vld [vmem:[%s305 + $0x308] sm:$0xff]
        %v468 = vld [vmem:[%s305 + $0x310] sm:$0xff]
        %v469 = vld [vmem:[%s305 + $0x318] sm:$0xff]
        %v470 = vld [vmem:[%s305 + $0x320] sm:$0xff]
        %v471 = vld [vmem:[%s305 + $0x328] sm:$0xff]
        %v472 = vld [vmem:[%s305 + $0x330] sm:$0xff]
        %v473 = vld [vmem:[%s305 + $0x338] sm:$0xff]
        %v474 = vld [vmem:[%s305 + $0x340] sm:$0xff]
        %v475 = vld [vmem:[%s305 + $0x348] sm:$0xff]
        %v476 = vld [vmem:[%s305 + $0x350] sm:$0xff]
        %v477 = vld [vmem:[%s305 + $0x358] sm:$0xff]
        %v478 = vld [vmem:[%s305 + $0x360] sm:$0xff]
        %v479 = vld [vmem:[%s305 + $0x368] sm:$0xff]
        %v480 = vld [vmem:[%s305 + $0x370] sm:$0xff]
        %v481 = vld [vmem:[%s305 + $0x378] sm:$0xff]
        %v482 = vld [vmem:[%s305 + $0x380] sm:$0xff]
        %v483 = vld [vmem:[%s305 + $0x388] sm:$0xff]
        %v484 = vld [vmem:[%s305 + $0x390] sm:$0xff]
        %v485 = vld [vmem:[%s305 + $0x398] sm:$0xff]
        %v486 = vld [vmem:[%s305 + $0x3a0] sm:$0xff]
        %v487 = vld [vmem:[%s305 + $0x3a8] sm:$0xff]
        %v488 = vld [vmem:[%s305 + $0x3b0] sm:$0xff]
        %v489 = vld [vmem:[%s305 + $0x3b8] sm:$0xff]
        %v490 = vld [vmem:[%s305 + $0x3c0] sm:$0xff]
        %v491 = vld [vmem:[%s305 + $0x3c8] sm:$0xff]
        %v492 = vld [vmem:[%s305 + $0x3d0] sm:$0xff]
        %v493 = vld [vmem:[%s305 + $0x3d8] sm:$0xff]
        %v494 = vld [vmem:[%s305 + $0x3e0] sm:$0xff]
        %v495 = vld [vmem:[%s305 + $0x3e8] sm:$0xff]
        %v496 = vld [vmem:[%s305 + $0x3f0] sm:$0xff]
        %v497 = vld [vmem:[%s305 + $0x3f8] sm:$0xff]
        %v498 = vld [vmem:[%s305 + $0x400] sm:$0xff]
        %v499 = vld [vmem:[%s305 + $0x408] sm:$0xff]
        %v500 = vld [vmem:[%s305 + $0x410] sm:$0xff]
        %v501 = vld [vmem:[%s305 + $0x418] sm:$0xff]
        %v502 = vld [vmem:[%s305 + $0x420] sm:$0xff]
        %v503 = vld [vmem:[%s305 + $0x428] sm:$0xff]
        %v504 = vld [vmem:[%s305 + $0x430] sm:$0xff]
        %v505 = vld [vmem:[%s305 + $0x438] sm:$0xff]
        %v506 = vld [vmem:[%s305 + $0x440] sm:$0xff]
        %v507 = vld [vmem:[%s305 + $0x448] sm:$0xff]
        %v508 = vld [vmem:[%s305 + $0x450] sm:$0xff]
        %v509 = vld [vmem:[%s305 + $0x458] sm:$0xff]
        %v510 = vld [vmem:[%s305 + $0x460] sm:$0xff]
        %v511 = vld [vmem:[%s305 + $0x468] sm:$0xff]
        %v512 = vld [vmem:[%s305 + $0x470] sm:$0xff]
        %v513 = vld [vmem:[%s305 + $0x478] sm:$0xff]
        %v514 = vld [vmem:[%s305 + $0x480] sm:$0xff]
        %v515 = vld [vmem:[%s305 + $0x488] sm:$0xff]
        %v516 = vld [vmem:[%s305 + $0x490] sm:$0xff]
        %v517 = vld [vmem:[%s305 + $0x498] sm:$0xff]
        %v518 = vld [vmem:[%s305 + $0x4a0] sm:$0xff]
        %v519 = vld [vmem:[%s305 + $0x4a8] sm:$0xff]
        %v520 = vld [vmem:[%s305 + $0x4b0] sm:$0xff]
        %v521 = vld [vmem:[%s305 + $0x4b8] sm:$0xff]
        %v522 = vld [vmem:[%s305 + $0x4c0] sm:$0xff]
        %v523 = vld [vmem:[%s305 + $0x4c8] sm:$0xff]
        %v524 = vld [vmem:[%s305 + $0x4d0] sm:$0xff]
        %v525 = vld [vmem:[%s305 + $0x4d8] sm:$0xff]
        %v526 = vld [vmem:[%s305 + $0x4e0] sm:$0xff]
        %v527 = vld [vmem:[%s305 + $0x4e8] sm:$0xff]
        %v528 = vld [vmem:[%s305 + $0x4f0] sm:$0xff]
        %v529 = vld [vmem:[%s305 + $0x4f8] sm:$0xff]
        %v530 = vld [vmem:[%s305 + $0x500] sm:$0xff]
        %v531 = vld [vmem:[%s305 + $0x508] sm:$0xff]
        %v532 = vld [vmem:[%s305 + $0x510] sm:$0xff]
        %v533 = vld [vmem:[%s305 + $0x518] sm:$0xff]
        %v534 = vld [vmem:[%s305 + $0x520] sm:$0xff]
        %v535 = vld [vmem:[%s305 + $0x528] sm:$0xff]
        %v536 = vld [vmem:[%s305 + $0x530] sm:$0xff]
        %v537 = vld [vmem:[%s305 + $0x538] sm:$0xff]
        %v538 = vld [vmem:[%s305 + $0x540] sm:$0xff]
        %v539 = vld [vmem:[%s305 + $0x548] sm:$0xff]
        %v540 = vld [vmem:[%s305 + $0x550] sm:$0xff]
        %v541 = vld [vmem:[%s305 + $0x558] sm:$0xff]
        %v542 = vld [vmem:[%s305 + $0x560] sm:$0xff]
        %v543 = vld [vmem:[%s305 + $0x568] sm:$0xff]
        %v544 = vld [vmem:[%s305 + $0x570] sm:$0xff]
        %v545 = vld [vmem:[%s305 + $0x578] sm:$0xff]
        %v546 = vld [vmem:[%s305 + $0x580] sm:$0xff]
        %v547 = vld [vmem:[%s305 + $0x588] sm:$0xff]
        %v548 = vld [vmem:[%s305 + $0x590] sm:$0xff]
        %v549 = vld [vmem:[%s305 + $0x598] sm:$0xff]
        %v550 = vld [vmem:[%s305 + $0x5a0] sm:$0xff]
        %v551 = vld [vmem:[%s305 + $0x5a8] sm:$0xff]
        %v552 = vld [vmem:[%s305 + $0x5b0] sm:$0xff]
        %v553 = vld [vmem:[%s305 + $0x5b8] sm:$0xff]
        %v554 = vld [vmem:[%s305 + $0x5c0] sm:$0xff]
        %v555 = vld [vmem:[%s305 + $0x5c8] sm:$0xff]
        %v556 = vld [vmem:[%s305 + $0x5d0] sm:$0xff]
        %v557 = vld [vmem:[%s305 + $0x5d8] sm:$0xff]
        %v558 = vld [vmem:[%s305 + $0x5e0] sm:$0xff]
        %v559 = vld [vmem:[%s305 + $0x5e8] sm:$0xff]
        %v560 = vld [vmem:[%s305 + $0x5f0] sm:$0xff]
        %v561 = vld [vmem:[%s305 + $0x5f8] sm:$0xff]
        %v562 = vld [vmem:[%s305 + $0x600] sm:$0xff]
        %v563 = vld [vmem:[%s305 + $0x608] sm:$0xff]
        %v564 = vld [vmem:[%s305 + $0x610] sm:$0xff]
        %v565 = vld [vmem:[%s305 + $0x618] sm:$0xff]
        %v566 = vld [vmem:[%s305 + $0x620] sm:$0xff]
        %v567 = vld [vmem:[%s305 + $0x628] sm:$0xff]
        %v568 = vld [vmem:[%s305 + $0x630] sm:$0xff]
        %v569 = vld [vmem:[%s305 + $0x638] sm:$0xff]
        %v570 = vld [vmem:[%s305 + $0x640] sm:$0xff]
        %v571 = vld [vmem:[%s305 + $0x648] sm:$0xff]
        %v572 = vld [vmem:[%s305 + $0x650] sm:$0xff]
        %v573 = vld [vmem:[%s305 + $0x658] sm:$0xff]
        %v574 = vld [vmem:[%s305 + $0x660] sm:$0xff]
        %v575 = vld [vmem:[%s305 + $0x668] sm:$0xff]
        %v576 = vld [vmem:[%s305 + $0x670] sm:$0xff]
        %v577 = vld [vmem:[%s305 + $0x678] sm:$0xff]
        %v578 = vld [vmem:[%s305 + $0x680] sm:$0xff]
        %v579 = vld [vmem:[%s305 + $0x688] sm:$0xff]
        %v580 = vld [vmem:[%s305 + $0x690] sm:$0xff]
        %v581 = vld [vmem:[%s305 + $0x698] sm:$0xff]
        %v582 = vld [vmem:[%s305 + $0x6a0] sm:$0xff]
        %v583 = vld [vmem:[%s305 + $0x6a8] sm:$0xff]
        %v584 = vld [vmem:[%s305 + $0x6b0] sm:$0xff]
        %v585 = vld [vmem:[%s305 + $0x6b8] sm:$0xff]
        %v586 = vld [vmem:[%s305 + $0x6c0] sm:$0xff]
        %v587 = vld [vmem:[%s305 + $0x6c8] sm:$0xff]
        %v588 = vld [vmem:[%s305 + $0x6d0] sm:$0xff]
        %v589 = vld [vmem:[%s305 + $0x6d8] sm:$0xff]
        %v590 = vld [vmem:[%s305 + $0x6e0] sm:$0xff]
        %v591 = vld [vmem:[%s305 + $0x6e8] sm:$0xff]
        %v592 = vld [vmem:[%s305 + $0x6f0] sm:$0xff]
        %v593 = vld [vmem:[%s305 + $0x6f8] sm:$0xff]
        %v594 = vld [vmem:[%s305 + $0x700] sm:$0xff]
        %v595 = vld [vmem:[%s305 + $0x708] sm:$0xff]
        %v596 = vld [vmem:[%s305 + $0x710] sm:$0xff]
        %v597 = vld [vmem:[%s305 + $0x718] sm:$0xff]
        %v598 = vld [vmem:[%s305 + $0x720] sm:$0xff]
        %v599 = vld [vmem:[%s305 + $0x728] sm:$0xff]
        %v600 = vld [vmem:[%s305 + $0x730] sm:$0xff]
        %v601 = vld [vmem:[%s305 + $0x738] sm:$0xff]
        %v602 = vld [vmem:[%s305 + $0x740] sm:$0xff]
        %v603 = vld [vmem:[%s305 + $0x748] sm:$0xff]
        %v604 = vld [vmem:[%s305 + $0x750] sm:$0xff]
        %v605 = vld [vmem:[%s305 + $0x758] sm:$0xff]
        %v606 = vld [vmem:[%s305 + $0x760] sm:$0xff]
        %v607 = vld [vmem:[%s305 + $0x768] sm:$0xff]
        %v608 = vld [vmem:[%s305 + $0x770] sm:$0xff]
        %v609 = vld [vmem:[%s305 + $0x778] sm:$0xff]
        %v610 = vld [vmem:[%s305 + $0x780] sm:$0xff]
        %v611 = vld [vmem:[%s305 + $0x788] sm:$0xff]
        %v612 = vld [vmem:[%s305 + $0x790] sm:$0xff]
        %v613 = vld [vmem:[%s305 + $0x798] sm:$0xff]
        %v614 = vld [vmem:[%s305 + $0x7a0] sm:$0xff]
        %v615 = vld [vmem:[%s305 + $0x7a8] sm:$0xff]
        %v616 = vld [vmem:[%s305 + $0x7b0] sm:$0xff]
        %v617 = vld [vmem:[%s305 + $0x7b8] sm:$0xff]
        %v618 = vld [vmem:[%s305 + $0x7c0] sm:$0xff]
        %v619 = vld [vmem:[%s305 + $0x7c8] sm:$0xff]
        %v620 = vld [vmem:[%s305 + $0x7d0] sm:$0xff]
        %v621 = vld [vmem:[%s305 + $0x7d8] sm:$0xff]
        %v622 = vld [vmem:[%s305 + $0x7e0] sm:$0xff]
        %v623 = vld [vmem:[%s305 + $0x7e8] sm:$0xff]
        %v624 = vld [vmem:[%s305 + $0x7f0] sm:$0xff]
        %v625 = vld [vmem:[%s305 + $0x7f8] sm:$0xff]
        %v626 = vld [vmem:[%s305 + $0x800] sm:$0xff]
        %v627 = vld [vmem:[%s305 + $0x808] sm:$0xff]
        %v628 = vld [vmem:[%s305 + $0x810] sm:$0xff]
        %v629 = vld [vmem:[%s305 + $0x818] sm:$0xff]
        %v630 = vld [vmem:[%s305 + $0x820] sm:$0xff]
        %v631 = vld [vmem:[%s305 + $0x828] sm:$0xff]
        %v632 = vld [vmem:[%s305 + $0x830] sm:$0xff]
        %v633 = vld [vmem:[%s305 + $0x838] sm:$0xff]
        %v634 = vld [vmem:[%s305 + $0x840] sm:$0xff]
        %v635 = vld [vmem:[%s305 + $0x848] sm:$0xff]
        %v636 = vld [vmem:[%s305 + $0x850] sm:$0xff]
        %v637 = vld [vmem:[%s305 + $0x858] sm:$0xff]
        %v638 = vld [vmem:[%s305 + $0x860] sm:$0xff]
        %v639 = vld [vmem:[%s305 + $0x868] sm:$0xff]
        %v640 = vld [vmem:[%s305 + $0x870] sm:$0xff]
        %v641 = vld [vmem:[%s305 + $0x878] sm:$0xff]
        %v642 = vld [vmem:[%s305 + $0x880] sm:$0xff]
        %v643 = vld [vmem:[%s305 + $0x888] sm:$0xff]
        %v644 = vld [vmem:[%s305 + $0x890] sm:$0xff]
        %v645 = vld [vmem:[%s305 + $0x898] sm:$0xff]
        %v646 = vld [vmem:[%s305 + $0x8a0] sm:$0xff]
        %v647 = vld [vmem:[%s305 + $0x8a8] sm:$0xff]
        %v648 = vld [vmem:[%s305 + $0x8b0] sm:$0xff]
        %v649 = vld [vmem:[%s305 + $0x8b8] sm:$0xff]
        %v650 = vld [vmem:[%s305 + $0x8c0] sm:$0xff]
        %v651 = vld [vmem:[%s305 + $0x8c8] sm:$0xff]
        %v652 = vld [vmem:[%s305 + $0x8d0] sm:$0xff]
        %v653 = vld [vmem:[%s305 + $0x8d8] sm:$0xff]
        %v654 = vld [vmem:[%s305 + $0x8e0] sm:$0xff]
        %v655 = vld [vmem:[%s305 + $0x8e8] sm:$0xff]
        %v656 = vld [vmem:[%s305 + $0x8f0] sm:$0xff]
        %v657 = vld [vmem:[%s305 + $0x8f8] sm:$0xff]
        %v658 = vunpack.c.l.s8.bf16 %v370
        %v659 = vunpack.c.l.s8.bf16 %v371
        %v660 = vunpack.c.l.s8.bf16 %v372
        %v661 = vunpack.c.l.s8.bf16 %v373
        %v662 = vunpack.c.l.s8.bf16 %v374
        %v663 = vunpack.c.l.s8.bf16 %v375
        %v664 = vunpack.c.h.s8.bf16 %v370
        %v665 = vunpack.c.h.s8.bf16 %v371
        %v666 = vunpack.c.h.s8.bf16 %v372
        %v667 = vunpack.c.h.s8.bf16 %v373
        %v668 = vunpack.c.h.s8.bf16 %v374
        %v669 = vunpack.c.h.s8.bf16 %v375
        %v670 = vunpack.c.l.s8.bf16 %v376
        %v671 = vunpack.c.l.s8.bf16 %v377
        %v672 = vunpack.c.l.s8.bf16 %v378
        %v673 = vunpack.c.l.s8.bf16 %v379
        %v674 = vunpack.c.l.s8.bf16 %v380
        %v675 = vunpack.c.l.s8.bf16 %v381
        %v676 = vunpack.c.h.s8.bf16 %v376
        %v677 = vunpack.c.h.s8.bf16 %v377
        %v678 = vunpack.c.h.s8.bf16 %v378
        %v679 = vunpack.c.h.s8.bf16 %v379
        %v680 = vunpack.c.h.s8.bf16 %v380
        %v681 = vunpack.c.h.s8.bf16 %v381
        %v682 = vunpack.c.l.s8.bf16 %v382
        %v683 = vunpack.c.l.s8.bf16 %v383
        %v684 = vunpack.c.l.s8.bf16 %v384
        %v685 = vunpack.c.l.s8.bf16 %v385
        %v686 = vunpack.c.l.s8.bf16 %v386
        %v687 = vunpack.c.l.s8.bf16 %v387
        %v688 = vunpack.c.h.s8.bf16 %v382
        %v689 = vunpack.c.h.s8.bf16 %v383
        %v690 = vunpack.c.h.s8.bf16 %v384
        %v691 = vunpack.c.h.s8.bf16 %v385
        %v692 = vunpack.c.h.s8.bf16 %v386
        %v693 = vunpack.c.h.s8.bf16 %v387
        %v694 = vunpack.c.l.s8.bf16 %v388
        %v695 = vunpack.c.l.s8.bf16 %v389
        %v696 = vunpack.c.l.s8.bf16 %v390
        %v697 = vunpack.c.l.s8.bf16 %v391
        %v698 = vunpack.c.l.s8.bf16 %v392
        %v699 = vunpack.c.l.s8.bf16 %v393
        %v700 = vunpack.c.h.s8.bf16 %v388
        %v701 = vunpack.c.h.s8.bf16 %v389
        %v702 = vunpack.c.h.s8.bf16 %v390
        %v703 = vunpack.c.h.s8.bf16 %v391
        %v704 = vunpack.c.h.s8.bf16 %v392
        %v705 = vunpack.c.h.s8.bf16 %v393
        %v706 = vunpack.c.l.s8.bf16 %v394
        %v707 = vunpack.c.l.s8.bf16 %v395
        %v708 = vunpack.c.l.s8.bf16 %v396
        %v709 = vunpack.c.l.s8.bf16 %v397
        %v710 = vunpack.c.l.s8.bf16 %v398
        %v711 = vunpack.c.l.s8.bf16 %v399
        %v712 = vunpack.c.h.s8.bf16 %v394
        %v713 = vunpack.c.h.s8.bf16 %v395
        %v714 = vunpack.c.h.s8.bf16 %v396
        %v715 = vunpack.c.h.s8.bf16 %v397
        %v716 = vunpack.c.h.s8.bf16 %v398
        %v717 = vunpack.c.h.s8.bf16 %v399
        %v718 = vunpack.c.l.s8.bf16 %v400
        %v719 = vunpack.c.l.s8.bf16 %v401
        %v720 = vunpack.c.l.s8.bf16 %v402
        %v721 = vunpack.c.l.s8.bf16 %v403
        %v722 = vunpack.c.l.s8.bf16 %v404
        %v723 = vunpack.c.l.s8.bf16 %v405
        %v724 = vunpack.c.h.s8.bf16 %v400
        %v725 = vunpack.c.h.s8.bf16 %v401
        %v726 = vunpack.c.h.s8.bf16 %v402
        %v727 = vunpack.c.h.s8.bf16 %v403
        %v728 = vunpack.c.h.s8.bf16 %v404
        %v729 = vunpack.c.h.s8.bf16 %v405
        %v730 = vunpack.c.l.s8.bf16 %v406
        %v731 = vunpack.c.l.s8.bf16 %v407
        %v732 = vunpack.c.l.s8.bf16 %v408
        %v733 = vunpack.c.l.s8.bf16 %v409
        %v734 = vunpack.c.l.s8.bf16 %v410
        %v735 = vunpack.c.l.s8.bf16 %v411
        %v736 = vunpack.c.h.s8.bf16 %v406
        %v737 = vunpack.c.h.s8.bf16 %v407
        %v738 = vunpack.c.h.s8.bf16 %v408
        %v739 = vunpack.c.h.s8.bf16 %v409
        %v740 = vunpack.c.h.s8.bf16 %v410
        %v741 = vunpack.c.h.s8.bf16 %v411
        %v742 = vunpack.c.l.s8.bf16 %v412
        %v743 = vunpack.c.l.s8.bf16 %v413
        %v744 = vunpack.c.l.s8.bf16 %v414
        %v745 = vunpack.c.l.s8.bf16 %v415
        %v746 = vunpack.c.l.s8.bf16 %v416
        %v747 = vunpack.c.l.s8.bf16 %v417
        %v748 = vunpack.c.h.s8.bf16 %v412
        %v749 = vunpack.c.h.s8.bf16 %v413
        %v750 = vunpack.c.h.s8.bf16 %v414
        %v751 = vunpack.c.h.s8.bf16 %v415
        %v752 = vunpack.c.h.s8.bf16 %v416
        %v753 = vunpack.c.h.s8.bf16 %v417
        %v754 = vunpack.c.l.s8.bf16 %v418
        %v755 = vunpack.c.l.s8.bf16 %v419
        %v756 = vunpack.c.l.s8.bf16 %v420
        %v757 = vunpack.c.l.s8.bf16 %v421
        %v758 = vunpack.c.l.s8.bf16 %v422
        %v759 = vunpack.c.l.s8.bf16 %v423
        %v760 = vunpack.c.h.s8.bf16 %v418
        %v761 = vunpack.c.h.s8.bf16 %v419
        %v762 = vunpack.c.h.s8.bf16 %v420
        %v763 = vunpack.c.h.s8.bf16 %v421
        %v764 = vunpack.c.h.s8.bf16 %v422
        %v765 = vunpack.c.h.s8.bf16 %v423
        %v766 = vunpack.c.l.s8.bf16 %v424
        %v767 = vunpack.c.l.s8.bf16 %v425
        %v768 = vunpack.c.l.s8.bf16 %v426
        %v769 = vunpack.c.l.s8.bf16 %v427
        %v770 = vunpack.c.l.s8.bf16 %v428
        %v771 = vunpack.c.l.s8.bf16 %v429
        %v772 = vunpack.c.h.s8.bf16 %v424
        %v773 = vunpack.c.h.s8.bf16 %v425
        %v774 = vunpack.c.h.s8.bf16 %v426
        %v775 = vunpack.c.h.s8.bf16 %v427
        %v776 = vunpack.c.h.s8.bf16 %v428
        %v777 = vunpack.c.h.s8.bf16 %v429
        %v778 = vunpack.c.l.s8.bf16 %v430
        %v779 = vunpack.c.l.s8.bf16 %v431
        %v780 = vunpack.c.l.s8.bf16 %v432
        %v781 = vunpack.c.l.s8.bf16 %v433
        %v782 = vunpack.c.l.s8.bf16 %v434
        %v783 = vunpack.c.l.s8.bf16 %v435
        %v784 = vunpack.c.h.s8.bf16 %v430
        %v785 = vunpack.c.h.s8.bf16 %v431
        %v786 = vunpack.c.h.s8.bf16 %v432
        %v787 = vunpack.c.h.s8.bf16 %v433
        %v788 = vunpack.c.h.s8.bf16 %v434
        %v789 = vunpack.c.h.s8.bf16 %v435
        %v790 = vunpack.c.l.s8.bf16 %v436
        %v791 = vunpack.c.l.s8.bf16 %v437
        %v792 = vunpack.c.l.s8.bf16 %v438
        %v793 = vunpack.c.l.s8.bf16 %v439
        %v794 = vunpack.c.l.s8.bf16 %v440
        %v795 = vunpack.c.l.s8.bf16 %v441
        %v796 = vunpack.c.h.s8.bf16 %v436
        %v797 = vunpack.c.h.s8.bf16 %v437
        %v798 = vunpack.c.h.s8.bf16 %v438
        %v799 = vunpack.c.h.s8.bf16 %v439
        %v800 = vunpack.c.h.s8.bf16 %v440
        %v801 = vunpack.c.h.s8.bf16 %v441
        %v802 = vunpack.c.l.s8.bf16 %v442
        %v803 = vunpack.c.l.s8.bf16 %v443
        %v804 = vunpack.c.l.s8.bf16 %v444
        %v805 = vunpack.c.l.s8.bf16 %v445
        %v806 = vunpack.c.l.s8.bf16 %v446
        %v807 = vunpack.c.l.s8.bf16 %v447
        %v808 = vunpack.c.h.s8.bf16 %v442
        %v809 = vunpack.c.h.s8.bf16 %v443
        %v810 = vunpack.c.h.s8.bf16 %v444
        %v811 = vunpack.c.h.s8.bf16 %v445
        %v812 = vunpack.c.h.s8.bf16 %v446
        %v813 = vunpack.c.h.s8.bf16 %v447
        %v814 = vunpack.c.l.s8.bf16 %v448
        %v815 = vunpack.c.l.s8.bf16 %v449
        %v816 = vunpack.c.l.s8.bf16 %v450
        %v817 = vunpack.c.l.s8.bf16 %v451
        %v818 = vunpack.c.l.s8.bf16 %v452
        %v819 = vunpack.c.l.s8.bf16 %v453
        %v820 = vunpack.c.h.s8.bf16 %v448
        %v821 = vunpack.c.h.s8.bf16 %v449
        %v822 = vunpack.c.h.s8.bf16 %v450
        %v823 = vunpack.c.h.s8.bf16 %v451
        %v824 = vunpack.c.h.s8.bf16 %v452
        %v825 = vunpack.c.h.s8.bf16 %v453
        %v826 = vunpack.c.l.s8.bf16 %v454
        %v827 = vunpack.c.l.s8.bf16 %v455
        %v828 = vunpack.c.l.s8.bf16 %v456
        %v829 = vunpack.c.l.s8.bf16 %v457
        %v830 = vunpack.c.l.s8.bf16 %v458
        %v831 = vunpack.c.l.s8.bf16 %v459
        %v832 = vunpack.c.h.s8.bf16 %v454
        %v833 = vunpack.c.h.s8.bf16 %v455
        %v834 = vunpack.c.h.s8.bf16 %v456
        %v835 = vunpack.c.h.s8.bf16 %v457
        %v836 = vunpack.c.h.s8.bf16 %v458
        %v837 = vunpack.c.h.s8.bf16 %v459
        %v838 = vunpack.c.l.s8.bf16 %v460
        %v839 = vunpack.c.l.s8.bf16 %v461
        %v840 = vunpack.c.l.s8.bf16 %v462
        %v841 = vunpack.c.l.s8.bf16 %v463
        %v842 = vunpack.c.l.s8.bf16 %v464
        %v843 = vunpack.c.l.s8.bf16 %v465
        %v844 = vunpack.c.h.s8.bf16 %v460
        %v845 = vunpack.c.h.s8.bf16 %v461
        %v846 = vunpack.c.h.s8.bf16 %v462
        %v847 = vunpack.c.h.s8.bf16 %v463
        %v848 = vunpack.c.h.s8.bf16 %v464
        %v849 = vunpack.c.h.s8.bf16 %v465
        %v850 = vunpack.c.l.s8.bf16 %v466
        %v851 = vunpack.c.l.s8.bf16 %v467
        %v852 = vunpack.c.l.s8.bf16 %v468
        %v853 = vunpack.c.l.s8.bf16 %v469
        %v854 = vunpack.c.l.s8.bf16 %v470
        %v855 = vunpack.c.l.s8.bf16 %v471
        %v856 = vunpack.c.h.s8.bf16 %v466
        %v857 = vunpack.c.h.s8.bf16 %v467
        %v858 = vunpack.c.h.s8.bf16 %v468
        %v859 = vunpack.c.h.s8.bf16 %v469
        %v860 = vunpack.c.h.s8.bf16 %v470
        %v861 = vunpack.c.h.s8.bf16 %v471
        %v862 = vunpack.c.l.s8.bf16 %v472
        %v863 = vunpack.c.l.s8.bf16 %v473
        %v864 = vunpack.c.l.s8.bf16 %v474
        %v865 = vunpack.c.l.s8.bf16 %v475
        %v866 = vunpack.c.l.s8.bf16 %v476
        %v867 = vunpack.c.l.s8.bf16 %v477
        %v868 = vunpack.c.h.s8.bf16 %v472
        %v869 = vunpack.c.h.s8.bf16 %v473
        %v870 = vunpack.c.h.s8.bf16 %v474
        %v871 = vunpack.c.h.s8.bf16 %v475
        %v872 = vunpack.c.h.s8.bf16 %v476
        %v873 = vunpack.c.h.s8.bf16 %v477
        %v874 = vunpack.c.l.s8.bf16 %v478
        %v875 = vunpack.c.l.s8.bf16 %v479
        %v876 = vunpack.c.l.s8.bf16 %v480
        %v877 = vunpack.c.l.s8.bf16 %v481
        %v878 = vunpack.c.l.s8.bf16 %v482
        %v879 = vunpack.c.l.s8.bf16 %v483
        %v880 = vunpack.c.h.s8.bf16 %v478
        %v881 = vunpack.c.h.s8.bf16 %v479
        %v882 = vunpack.c.h.s8.bf16 %v480
        %v883 = vunpack.c.h.s8.bf16 %v481
        %v884 = vunpack.c.h.s8.bf16 %v482
        %v885 = vunpack.c.h.s8.bf16 %v483
        %v886 = vunpack.c.l.s8.bf16 %v484
        %v887 = vunpack.c.l.s8.bf16 %v485
        %v888 = vunpack.c.l.s8.bf16 %v486
        %v889 = vunpack.c.l.s8.bf16 %v487
        %v890 = vunpack.c.l.s8.bf16 %v488
        %v891 = vunpack.c.l.s8.bf16 %v489
        %v892 = vunpack.c.h.s8.bf16 %v484
        %v893 = vunpack.c.h.s8.bf16 %v485
        %v894 = vunpack.c.h.s8.bf16 %v486
        %v895 = vunpack.c.h.s8.bf16 %v487
        %v896 = vunpack.c.h.s8.bf16 %v488
        %v897 = vunpack.c.h.s8.bf16 %v489
        %v898 = vunpack.c.l.s8.bf16 %v490
        %v899 = vunpack.c.l.s8.bf16 %v491
        %v900 = vunpack.c.l.s8.bf16 %v492
        %v901 = vunpack.c.l.s8.bf16 %v493
        %v902 = vunpack.c.l.s8.bf16 %v494
        %v903 = vunpack.c.l.s8.bf16 %v495
        %v904 = vunpack.c.h.s8.bf16 %v490
        %v905 = vunpack.c.h.s8.bf16 %v491
        %v906 = vunpack.c.h.s8.bf16 %v492
        %v907 = vunpack.c.h.s8.bf16 %v493
        %v908 = vunpack.c.h.s8.bf16 %v494
        %v909 = vunpack.c.h.s8.bf16 %v495
        %v910 = vunpack.c.l.s8.bf16 %v496
        %v911 = vunpack.c.l.s8.bf16 %v497
        %v912 = vunpack.c.l.s8.bf16 %v498
        %v913 = vunpack.c.l.s8.bf16 %v499
        %v914 = vunpack.c.l.s8.bf16 %v500
        %v915 = vunpack.c.l.s8.bf16 %v501
        %v916 = vunpack.c.h.s8.bf16 %v496
        %v917 = vunpack.c.h.s8.bf16 %v497
        %v918 = vunpack.c.h.s8.bf16 %v498
        %v919 = vunpack.c.h.s8.bf16 %v499
        %v920 = vunpack.c.h.s8.bf16 %v500
        %v921 = vunpack.c.h.s8.bf16 %v501
        %v922 = vunpack.c.l.s8.bf16 %v502
        %v923 = vunpack.c.l.s8.bf16 %v503
        %v924 = vunpack.c.l.s8.bf16 %v504
        %v925 = vunpack.c.l.s8.bf16 %v505
        %v926 = vunpack.c.l.s8.bf16 %v506
        %v927 = vunpack.c.l.s8.bf16 %v507
        %v928 = vunpack.c.h.s8.bf16 %v502
        %v929 = vunpack.c.h.s8.bf16 %v503
        %v930 = vunpack.c.h.s8.bf16 %v504
        %v931 = vunpack.c.h.s8.bf16 %v505
        %v932 = vunpack.c.h.s8.bf16 %v506
        %v933 = vunpack.c.h.s8.bf16 %v507
        %v934 = vunpack.c.l.s8.bf16 %v508
        %v935 = vunpack.c.l.s8.bf16 %v509
        %v936 = vunpack.c.l.s8.bf16 %v510
        %v937 = vunpack.c.l.s8.bf16 %v511
        %v938 = vunpack.c.l.s8.bf16 %v512
        %v939 = vunpack.c.l.s8.bf16 %v513
        %v940 = vunpack.c.h.s8.bf16 %v508
        %v941 = vunpack.c.h.s8.bf16 %v509
        %v942 = vunpack.c.h.s8.bf16 %v510
        %v943 = vunpack.c.h.s8.bf16 %v511
        %v944 = vunpack.c.h.s8.bf16 %v512
        %v945 = vunpack.c.h.s8.bf16 %v513
        %v946 = vunpack.c.l.s8.bf16 %v514
        %v947 = vunpack.c.l.s8.bf16 %v515
        %v948 = vunpack.c.l.s8.bf16 %v516
        %v949 = vunpack.c.l.s8.bf16 %v517
        %v950 = vunpack.c.l.s8.bf16 %v518
        %v951 = vunpack.c.l.s8.bf16 %v519
        %v952 = vunpack.c.h.s8.bf16 %v514
        %v953 = vunpack.c.h.s8.bf16 %v515
        %v954 = vunpack.c.h.s8.bf16 %v516
        %v955 = vunpack.c.h.s8.bf16 %v517
        %v956 = vunpack.c.h.s8.bf16 %v518
        %v957 = vunpack.c.h.s8.bf16 %v519
        %v958 = vunpack.c.l.s8.bf16 %v520
        %v959 = vunpack.c.l.s8.bf16 %v521
        %v960 = vunpack.c.l.s8.bf16 %v522
        %v961 = vunpack.c.l.s8.bf16 %v523
        %v962 = vunpack.c.l.s8.bf16 %v524
        %v963 = vunpack.c.l.s8.bf16 %v525
        %v964 = vunpack.c.h.s8.bf16 %v520
        %v965 = vunpack.c.h.s8.bf16 %v521
        %v966 = vunpack.c.h.s8.bf16 %v522
        %v967 = vunpack.c.h.s8.bf16 %v523
        %v968 = vunpack.c.h.s8.bf16 %v524
        %v969 = vunpack.c.h.s8.bf16 %v525
        %v970 = vunpack.c.l.s8.bf16 %v526
        %v971 = vunpack.c.l.s8.bf16 %v527
        %v972 = vunpack.c.l.s8.bf16 %v528
        %v973 = vunpack.c.l.s8.bf16 %v529
        %v974 = vunpack.c.l.s8.bf16 %v530
        %v975 = vunpack.c.l.s8.bf16 %v531
        %v976 = vunpack.c.h.s8.bf16 %v526
        %v977 = vunpack.c.h.s8.bf16 %v527
        %v978 = vunpack.c.h.s8.bf16 %v528
        %v979 = vunpack.c.h.s8.bf16 %v529
        %v980 = vunpack.c.h.s8.bf16 %v530
        %v981 = vunpack.c.h.s8.bf16 %v531
        %v982 = vunpack.c.l.s8.bf16 %v532
        %v983 = vunpack.c.l.s8.bf16 %v533
        %v984 = vunpack.c.l.s8.bf16 %v534
        %v985 = vunpack.c.l.s8.bf16 %v535
        %v986 = vunpack.c.l.s8.bf16 %v536
        %v987 = vunpack.c.l.s8.bf16 %v537
        %v988 = vunpack.c.h.s8.bf16 %v532
        %v989 = vunpack.c.h.s8.bf16 %v533
        %v990 = vunpack.c.h.s8.bf16 %v534
        %v991 = vunpack.c.h.s8.bf16 %v535
        %v992 = vunpack.c.h.s8.bf16 %v536
        %v993 = vunpack.c.h.s8.bf16 %v537
        %v994 = vunpack.c.l.s8.bf16 %v538
        %v995 = vunpack.c.l.s8.bf16 %v539
        %v996 = vunpack.c.l.s8.bf16 %v540
        %v997 = vunpack.c.l.s8.bf16 %v541
        %v998 = vunpack.c.l.s8.bf16 %v542
        %v999 = vunpack.c.l.s8.bf16 %v543
        %v1000 = vunpack.c.h.s8.bf16 %v538
        %v1001 = vunpack.c.h.s8.bf16 %v539
        %v1002 = vunpack.c.h.s8.bf16 %v540
        %v1003 = vunpack.c.h.s8.bf16 %v541
        %v1004 = vunpack.c.h.s8.bf16 %v542
        %v1005 = vunpack.c.h.s8.bf16 %v543
        %v1006 = vunpack.c.l.s8.bf16 %v544
        %v1007 = vunpack.c.l.s8.bf16 %v545
        %v1008 = vunpack.c.l.s8.bf16 %v546
        %v1009 = vunpack.c.l.s8.bf16 %v547
        %v1010 = vunpack.c.l.s8.bf16 %v548
        %v1011 = vunpack.c.l.s8.bf16 %v549
        %v1012 = vunpack.c.h.s8.bf16 %v544
        %v1013 = vunpack.c.h.s8.bf16 %v545
        %v1014 = vunpack.c.h.s8.bf16 %v546
        %v1015 = vunpack.c.h.s8.bf16 %v547
        %v1016 = vunpack.c.h.s8.bf16 %v548
        %v1017 = vunpack.c.h.s8.bf16 %v549
        %v1018 = vunpack.c.l.s8.bf16 %v550
        %v1019 = vunpack.c.l.s8.bf16 %v551
        %v1020 = vunpack.c.l.s8.bf16 %v552
        %v1021 = vunpack.c.l.s8.bf16 %v553
        %v1022 = vunpack.c.l.s8.bf16 %v554
        %v1023 = vunpack.c.l.s8.bf16 %v555
        %v1024 = vunpack.c.h.s8.bf16 %v550
        %v1025 = vunpack.c.h.s8.bf16 %v551
        %v1026 = vunpack.c.h.s8.bf16 %v552
        %v1027 = vunpack.c.h.s8.bf16 %v553
        %v1028 = vunpack.c.h.s8.bf16 %v554
        %v1029 = vunpack.c.h.s8.bf16 %v555
        %v1030 = vunpack.c.l.s8.bf16 %v556
        %v1031 = vunpack.c.l.s8.bf16 %v557
        %v1032 = vunpack.c.l.s8.bf16 %v558
        %v1033 = vunpack.c.l.s8.bf16 %v559
        %v1034 = vunpack.c.l.s8.bf16 %v560
        %v1035 = vunpack.c.l.s8.bf16 %v561
        %v1036 = vunpack.c.h.s8.bf16 %v556
        %v1037 = vunpack.c.h.s8.bf16 %v557
        %v1038 = vunpack.c.h.s8.bf16 %v558
        %v1039 = vunpack.c.h.s8.bf16 %v559
        %v1040 = vunpack.c.h.s8.bf16 %v560
        %v1041 = vunpack.c.h.s8.bf16 %v561
        %v1042 = vunpack.c.l.s8.bf16 %v562
        %v1043 = vunpack.c.l.s8.bf16 %v563
        %v1044 = vunpack.c.l.s8.bf16 %v564
        %v1045 = vunpack.c.l.s8.bf16 %v565
        %v1046 = vunpack.c.l.s8.bf16 %v566
        %v1047 = vunpack.c.l.s8.bf16 %v567
        %v1048 = vunpack.c.h.s8.bf16 %v562
        %v1049 = vunpack.c.h.s8.bf16 %v563
        %v1050 = vunpack.c.h.s8.bf16 %v564
        %v1051 = vunpack.c.h.s8.bf16 %v565
        %v1052 = vunpack.c.h.s8.bf16 %v566
        %v1053 = vunpack.c.h.s8.bf16 %v567
        %v1054 = vunpack.c.l.s8.bf16 %v568
        %v1055 = vunpack.c.l.s8.bf16 %v569
        %v1056 = vunpack.c.l.s8.bf16 %v570
        %v1057 = vunpack.c.l.s8.bf16 %v571
        %v1058 = vunpack.c.l.s8.bf16 %v572
        %v1059 = vunpack.c.l.s8.bf16 %v573
        %v1060 = vunpack.c.h.s8.bf16 %v568
        %v1061 = vunpack.c.h.s8.bf16 %v569
        %v1062 = vunpack.c.h.s8.bf16 %v570
        %v1063 = vunpack.c.h.s8.bf16 %v571
        %v1064 = vunpack.c.h.s8.bf16 %v572
        %v1065 = vunpack.c.h.s8.bf16 %v573
        %v1066 = vunpack.c.l.s8.bf16 %v574
        %v1067 = vunpack.c.l.s8.bf16 %v575
        %v1068 = vunpack.c.l.s8.bf16 %v576
        %v1069 = vunpack.c.l.s8.bf16 %v577
        %v1070 = vunpack.c.l.s8.bf16 %v578
        %v1071 = vunpack.c.l.s8.bf16 %v579
        %v1072 = vunpack.c.h.s8.bf16 %v574
        %v1073 = vunpack.c.h.s8.bf16 %v575
        %v1074 = vunpack.c.h.s8.bf16 %v576
        %v1075 = vunpack.c.h.s8.bf16 %v577
        %v1076 = vunpack.c.h.s8.bf16 %v578
        %v1077 = vunpack.c.h.s8.bf16 %v579
        %v1078 = vunpack.c.l.s8.bf16 %v580
        %v1079 = vunpack.c.l.s8.bf16 %v581
        %v1080 = vunpack.c.l.s8.bf16 %v582
        %v1081 = vunpack.c.l.s8.bf16 %v583
        %v1082 = vunpack.c.l.s8.bf16 %v584
        %v1083 = vunpack.c.l.s8.bf16 %v585
        %v1084 = vunpack.c.h.s8.bf16 %v580
        %v1085 = vunpack.c.h.s8.bf16 %v581
        %v1086 = vunpack.c.h.s8.bf16 %v582
        %v1087 = vunpack.c.h.s8.bf16 %v583
        %v1088 = vunpack.c.h.s8.bf16 %v584
        %v1089 = vunpack.c.h.s8.bf16 %v585
        %v1090 = vunpack.c.l.s8.bf16 %v586
        %v1091 = vunpack.c.l.s8.bf16 %v587
        %v1092 = vunpack.c.l.s8.bf16 %v588
        %v1093 = vunpack.c.l.s8.bf16 %v589
        %v1094 = vunpack.c.l.s8.bf16 %v590
        %v1095 = vunpack.c.l.s8.bf16 %v591
        %v1096 = vunpack.c.h.s8.bf16 %v586
        %v1097 = vunpack.c.h.s8.bf16 %v587
        %v1098 = vunpack.c.h.s8.bf16 %v588
        %v1099 = vunpack.c.h.s8.bf16 %v589
        %v1100 = vunpack.c.h.s8.bf16 %v590
        %v1101 = vunpack.c.h.s8.bf16 %v591
        %v1102 = vunpack.c.l.s8.bf16 %v592
        %v1103 = vunpack.c.l.s8.bf16 %v593
        %v1104 = vunpack.c.l.s8.bf16 %v594
        %v1105 = vunpack.c.l.s8.bf16 %v595
        %v1106 = vunpack.c.l.s8.bf16 %v596
        %v1107 = vunpack.c.l.s8.bf16 %v597
        %v1108 = vunpack.c.h.s8.bf16 %v592
        %v1109 = vunpack.c.h.s8.bf16 %v593
        %v1110 = vunpack.c.h.s8.bf16 %v594
        %v1111 = vunpack.c.h.s8.bf16 %v595
        %v1112 = vunpack.c.h.s8.bf16 %v596
        %v1113 = vunpack.c.h.s8.bf16 %v597
        %v1114 = vunpack.c.l.s8.bf16 %v598
        %v1115 = vunpack.c.l.s8.bf16 %v599
        %v1116 = vunpack.c.l.s8.bf16 %v600
        %v1117 = vunpack.c.l.s8.bf16 %v601
        %v1118 = vunpack.c.l.s8.bf16 %v602
        %v1119 = vunpack.c.l.s8.bf16 %v603
        %v1120 = vunpack.c.h.s8.bf16 %v598
        %v1121 = vunpack.c.h.s8.bf16 %v599
        %v1122 = vunpack.c.h.s8.bf16 %v600
        %v1123 = vunpack.c.h.s8.bf16 %v601
        %v1124 = vunpack.c.h.s8.bf16 %v602
        %v1125 = vunpack.c.h.s8.bf16 %v603
        %v1126 = vunpack.c.l.s8.bf16 %v604
        %v1127 = vunpack.c.l.s8.bf16 %v605
        %v1128 = vunpack.c.l.s8.bf16 %v606
        %v1129 = vunpack.c.l.s8.bf16 %v607
        %v1130 = vunpack.c.l.s8.bf16 %v608
        %v1131 = vunpack.c.l.s8.bf16 %v609
        %v1132 = vunpack.c.h.s8.bf16 %v604
        %v1133 = vunpack.c.h.s8.bf16 %v605
        %v1134 = vunpack.c.h.s8.bf16 %v606
        %v1135 = vunpack.c.h.s8.bf16 %v607
        %v1136 = vunpack.c.h.s8.bf16 %v608
        %v1137 = vunpack.c.h.s8.bf16 %v609
        %v1138 = vunpack.c.l.s8.bf16 %v610
        %v1139 = vunpack.c.l.s8.bf16 %v611
        %v1140 = vunpack.c.l.s8.bf16 %v612
        %v1141 = vunpack.c.l.s8.bf16 %v613
        %v1142 = vunpack.c.l.s8.bf16 %v614
        %v1143 = vunpack.c.l.s8.bf16 %v615
        %v1144 = vunpack.c.h.s8.bf16 %v610
        %v1145 = vunpack.c.h.s8.bf16 %v611
        %v1146 = vunpack.c.h.s8.bf16 %v612
        %v1147 = vunpack.c.h.s8.bf16 %v613
        %v1148 = vunpack.c.h.s8.bf16 %v614
        %v1149 = vunpack.c.h.s8.bf16 %v615
        %v1150 = vunpack.c.l.s8.bf16 %v616
        %v1151 = vunpack.c.l.s8.bf16 %v617
        %v1152 = vunpack.c.l.s8.bf16 %v618
        %v1153 = vunpack.c.l.s8.bf16 %v619
        %v1154 = vunpack.c.l.s8.bf16 %v620
        %v1155 = vunpack.c.l.s8.bf16 %v621
        %v1156 = vunpack.c.h.s8.bf16 %v616
        %v1157 = vunpack.c.h.s8.bf16 %v617
        %v1158 = vunpack.c.h.s8.bf16 %v618
        %v1159 = vunpack.c.h.s8.bf16 %v619
        %v1160 = vunpack.c.h.s8.bf16 %v620
        %v1161 = vunpack.c.h.s8.bf16 %v621
        %v1162 = vunpack.c.l.s8.bf16 %v622
        %v1163 = vunpack.c.l.s8.bf16 %v623
        %v1164 = vunpack.c.l.s8.bf16 %v624
        %v1165 = vunpack.c.l.s8.bf16 %v625
        %v1166 = vunpack.c.l.s8.bf16 %v626
        %v1167 = vunpack.c.l.s8.bf16 %v627
        %v1168 = vunpack.c.h.s8.bf16 %v622
        %v1169 = vunpack.c.h.s8.bf16 %v623
        %v1170 = vunpack.c.h.s8.bf16 %v624
        %v1171 = vunpack.c.h.s8.bf16 %v625
        %v1172 = vunpack.c.h.s8.bf16 %v626
        %v1173 = vunpack.c.h.s8.bf16 %v627
        %v1174 = vunpack.c.l.s8.bf16 %v628
        %v1175 = vunpack.c.l.s8.bf16 %v629
        %v1176 = vunpack.c.l.s8.bf16 %v630
        %v1177 = vunpack.c.l.s8.bf16 %v631
        %v1178 = vunpack.c.l.s8.bf16 %v632
        %v1179 = vunpack.c.l.s8.bf16 %v633
        %v1180 = vunpack.c.h.s8.bf16 %v628
        %v1181 = vunpack.c.h.s8.bf16 %v629
        %v1182 = vunpack.c.h.s8.bf16 %v630
        %v1183 = vunpack.c.h.s8.bf16 %v631
        %v1184 = vunpack.c.h.s8.bf16 %v632
        %v1185 = vunpack.c.h.s8.bf16 %v633
        %v1186 = vunpack.c.l.s8.bf16 %v634
        %v1187 = vunpack.c.l.s8.bf16 %v635
        %v1188 = vunpack.c.l.s8.bf16 %v636
        %v1189 = vunpack.c.l.s8.bf16 %v637
        %v1190 = vunpack.c.l.s8.bf16 %v638
        %v1191 = vunpack.c.l.s8.bf16 %v639
        %v1192 = vunpack.c.h.s8.bf16 %v634
        %v1193 = vunpack.c.h.s8.bf16 %v635
        %v1194 = vunpack.c.h.s8.bf16 %v636
        %v1195 = vunpack.c.h.s8.bf16 %v637
        %v1196 = vunpack.c.h.s8.bf16 %v638
        %v1197 = vunpack.c.h.s8.bf16 %v639
        %v1198 = vunpack.c.l.s8.bf16 %v640
        %v1199 = vunpack.c.l.s8.bf16 %v641
        %v1200 = vunpack.c.l.s8.bf16 %v642
        %v1201 = vunpack.c.l.s8.bf16 %v643
        %v1202 = vunpack.c.l.s8.bf16 %v644
        %v1203 = vunpack.c.l.s8.bf16 %v645
        %v1204 = vunpack.c.h.s8.bf16 %v640
        %v1205 = vunpack.c.h.s8.bf16 %v641
        %v1206 = vunpack.c.h.s8.bf16 %v642
        %v1207 = vunpack.c.h.s8.bf16 %v643
        %v1208 = vunpack.c.h.s8.bf16 %v644
        %v1209 = vunpack.c.h.s8.bf16 %v645
        %v1210 = vunpack.c.l.s8.bf16 %v646
        %v1211 = vunpack.c.l.s8.bf16 %v647
        %v1212 = vunpack.c.l.s8.bf16 %v648
        %v1213 = vunpack.c.l.s8.bf16 %v649
        %v1214 = vunpack.c.l.s8.bf16 %v650
        %v1215 = vunpack.c.l.s8.bf16 %v651
        %v1216 = vunpack.c.h.s8.bf16 %v646
        %v1217 = vunpack.c.h.s8.bf16 %v647
        %v1218 = vunpack.c.h.s8.bf16 %v648
        %v1219 = vunpack.c.h.s8.bf16 %v649
        %v1220 = vunpack.c.h.s8.bf16 %v650
        %v1221 = vunpack.c.h.s8.bf16 %v651
        %v1222 = vunpack.c.l.s8.bf16 %v652
        %v1223 = vunpack.c.l.s8.bf16 %v653
        %v1224 = vunpack.c.l.s8.bf16 %v654
        %v1225 = vunpack.c.l.s8.bf16 %v655
        %v1226 = vunpack.c.l.s8.bf16 %v656
        %v1227 = vunpack.c.l.s8.bf16 %v657
        %v1228 = vunpack.c.h.s8.bf16 %v652
        %v1229 = vunpack.c.h.s8.bf16 %v653
        %v1230 = vunpack.c.h.s8.bf16 %v654
        %v1231 = vunpack.c.h.s8.bf16 %v655
        %v1232 = vunpack.c.h.s8.bf16 %v656
        %v1233 = vunpack.c.h.s8.bf16 %v657
        %v1234 = vld [vmem:[#allocation2] sm:$0xff]
        %v1235 = vld [vmem:[#allocation2 + $0x8] sm:$0xff]
        %v1236 = vld [vmem:[#allocation2 + $0x10] sm:$0xff]
        %v1237 = vld [vmem:[#allocation2 + $0x18] sm:$0xff]
        %v1238 = vld [vmem:[#allocation2 + $0x20] sm:$0xff]
        %v1239 = vld [vmem:[#allocation2 + $0x28] sm:$0xff]
        %v1240 = vld [vmem:[%s356] sm:$0xff]
        %v1241 = vld [vmem:[%s356 + $0x8] sm:$0xff]
        %v1242 = vld [vmem:[%s356 + $0x10] sm:$0xff]
        %v1243 = vld [vmem:[%s356 + $0x18] sm:$0xff]
        %v1244 = vld [vmem:[%s356 + $0x20] sm:$0xff]
        %v1245 = vld [vmem:[%s356 + $0x28] sm:$0xff]
        %v1252 = vunpack.c.l.b16 %v1240
        %v1253 = vunpack.c.h.b16 %v1240
        %v1254 = vunpack.c.l.b16 %v1241
        %v1255 = vunpack.c.h.b16 %v1241
        %v1256 = vunpack.c.l.b16 %v1242
        %v1257 = vunpack.c.h.b16 %v1242
        %v1258 = vunpack.c.l.b16 %v1243
        %v1259 = vunpack.c.h.b16 %v1243
        %v1260 = vunpack.c.l.b16 %v1244
        %v1261 = vunpack.c.h.b16 %v1244
        %v1262 = vunpack.c.l.b16 %v1245
        %v1263 = vunpack.c.h.b16 %v1245
        %v1264 = vpack.c.b16 %v1252, %v1252
        %v1265 = vpack.c.b16 %v1253, %v1253
        %v1266 = vpack.c.b16 %v1254, %v1254
        %v1267 = vpack.c.b16 %v1255, %v1255
        %v1268 = vpack.c.b16 %v1256, %v1256
        %v1269 = vpack.c.b16 %v1257, %v1257
        %v1270 = vpack.c.b16 %v1258, %v1258
        %v1271 = vpack.c.b16 %v1259, %v1259
        %v1272 = vpack.c.b16 %v1260, %v1260
        %v1273 = vpack.c.b16 %v1261, %v1261
        %v1274 = vpack.c.b16 %v1262, %v1262
        %v1275 = vpack.c.b16 %v1263, %v1263
        %1288 = vmatprep.subr.bf16.mxu0 %v701
        %1289 = vmatpush1.bf16.msra.mxu0 %v700
        %1290 = vmatprep.subr.bf16.mxu0 %v695
        %1291 = vmatpush1.bf16.msra.mxu0 %v694
        %1292 = vmatprep.subr.bf16.mxu0 %v689
        %1293 = vmatpush1.bf16.msra.mxu0 %v688
        %1294 = vmatprep.subr.bf16.mxu0 %v683
        %1295 = vmatpush1.bf16.msra.mxu0 %v682
        %1296 = vmatprep.subr.bf16.mxu0 %v677
        %1297 = vmatpush1.bf16.msra.mxu0 %v676
        %1298 = vmatprep.subr.bf16.mxu0 %v671
        %1299 = vmatpush1.bf16.msra.mxu0 %v670
        %1300 = vmatprep.subr.bf16.mxu0 %v665
        %1301 = vmatpush1.bf16.msra.mxu0 %v664
        %1302 = vmatprep.subr.bf16.mxu0 %v659
        %1303 = vmatpush1.bf16.msra.mxu0 %v658
        %1304 = vmatprep.subr.bf16.mxu0 %v749
        %1305 = vmatpush2.bf16.msra.mxu0 %v748
        %1306 = vmatprep.subr.bf16.mxu0 %v743
        %1307 = vmatpush2.bf16.msra.mxu0 %v742
        %1308 = vmatprep.subr.bf16.mxu0 %v737
        %1309 = vmatpush2.bf16.msra.mxu0 %v736
        %1310 = vmatprep.subr.bf16.mxu0 %v731
        %1311 = vmatpush2.bf16.msra.mxu0 %v730
        %1312 = vmatprep.subr.bf16.mxu0 %v725
        %1313 = vmatpush2.bf16.msra.mxu0 %v724
        %1314 = vmatprep.subr.bf16.mxu0 %v719
        %1315 = vmatpush2.bf16.msra.mxu0 %v718
        %1316 = vmatprep.subr.bf16.mxu0 %v713
        %1317 = vmatpush2.bf16.msra.mxu0 %v712
        %1318 = vmatprep.subr.bf16.mxu0 %v707
        %1319 = vmatpush2.bf16.msra.mxu0 %v706
        %1320 = vmatprep.mubr.bf16.mxu0 %v1265
        %1321 = vmatmul.mubr.bf16.gmra.mxu0 %v1264
        %v1322 = vpop.f32.mrf.mxu0
        %v1323 = vadd.f32 0.0, %v1322
        %v1324 = vpop.f32.mrf.mxu0
        %v1325 = vadd.f32 0.0, %v1324
        %v1326 = vpop.f32.mrf.mxu0
        %v1327 = vpop.f32.mrf.mxu0
        %1328 = vdwg.mxu0
        %1329 = vmatprep.subr.bf16.mxu0 %v797
        %1330 = vmatpush1.bf16.msra.mxu0 %v796
        %1331 = vmatprep.subr.bf16.mxu0 %v791
        %1332 = vmatpush1.bf16.msra.mxu0 %v790
        %1333 = vmatprep.subr.bf16.mxu0 %v785
        %1334 = vmatpush1.bf16.msra.mxu0 %v784
        %1335 = vmatprep.subr.bf16.mxu0 %v779
        %1336 = vmatpush1.bf16.msra.mxu0 %v778
        %1337 = vmatprep.subr.bf16.mxu0 %v773
        %1338 = vmatpush1.bf16.msra.mxu0 %v772
        %1339 = vmatprep.subr.bf16.mxu0 %v767
        %1340 = vmatpush1.bf16.msra.mxu0 %v766
        %1341 = vmatprep.subr.bf16.mxu0 %v761
        %1342 = vmatpush1.bf16.msra.mxu0 %v760
        %1343 = vmatprep.subr.bf16.mxu0 %v755
        %1344 = vmatpush1.bf16.msra.mxu0 %v754
        %1345 = vmatprep.subr.bf16.mxu0 %v845
        %1346 = vmatpush2.bf16.msra.mxu0 %v844
        %1347 = vmatprep.subr.bf16.mxu0 %v839
        %1348 = vmatpush2.bf16.msra.mxu0 %v838
        %1349 = vmatprep.subr.bf16.mxu0 %v833
        %1350 = vmatpush2.bf16.msra.mxu0 %v832
        %1351 = vmatprep.subr.bf16.mxu0 %v827
        %1352 = vmatpush2.bf16.msra.mxu0 %v826
        %1353 = vmatprep.subr.bf16.mxu0 %v821
        %1354 = vmatpush2.bf16.msra.mxu0 %v820
        %1355 = vmatprep.subr.bf16.mxu0 %v815
        %1356 = vmatpush2.bf16.msra.mxu0 %v814
        %1357 = vmatprep.subr.bf16.mxu0 %v809
        %1358 = vmatpush2.bf16.msra.mxu0 %v808
        %1359 = vmatprep.subr.bf16.mxu0 %v803
        %1360 = vmatpush2.bf16.msra.mxu0 %v802
        %1361 = vmatprep.mubr.bf16.mxu0 %v1267
        %1362 = vmatmul.mubr.bf16.gmra.mxu0 %v1266
        %v1363 = vpop.f32.mrf.mxu0
        %v1364 = vadd.f32 %v1323, %v1363
        %v1365 = vpop.f32.mrf.mxu0
        %v1366 = vadd.f32 %v1325, %v1365
        %v1367 = vpop.f32.mrf.mxu0
        %v1368 = vpop.f32.mrf.mxu0
        %1369 = vdwg.mxu0
        %1370 = vmatprep.subr.bf16.mxu0 %v893
        %1371 = vmatpush1.bf16.msra.mxu0 %v892
        %1372 = vmatprep.subr.bf16.mxu0 %v887
        %1373 = vmatpush1.bf16.msra.mxu0 %v886
        %1374 = vmatprep.subr.bf16.mxu0 %v881
        %1375 = vmatpush1.bf16.msra.mxu0 %v880
        %1376 = vmatprep.subr.bf16.mxu0 %v875
        %1377 = vmatpush1.bf16.msra.mxu0 %v874
        %1378 = vmatprep.subr.bf16.mxu0 %v869
        %1379 = vmatpush1.bf16.msra.mxu0 %v868
        %1380 = vmatprep.subr.bf16.mxu0 %v863
        %1381 = vmatpush1.bf16.msra.mxu0 %v862
        %1382 = vmatprep.subr.bf16.mxu0 %v857
        %1383 = vmatpush1.bf16.msra.mxu0 %v856
        %1384 = vmatprep.subr.bf16.mxu0 %v851
        %1385 = vmatpush1.bf16.msra.mxu0 %v850
        %1386 = vmatprep.subr.bf16.mxu0 %v941
        %1387 = vmatpush2.bf16.msra.mxu0 %v940
        %1388 = vmatprep.subr.bf16.mxu0 %v935
        %1389 = vmatpush2.bf16.msra.mxu0 %v934
        %1390 = vmatprep.subr.bf16.mxu0 %v929
        %1391 = vmatpush2.bf16.msra.mxu0 %v928
        %1392 = vmatprep.subr.bf16.mxu0 %v923
        %1393 = vmatpush2.bf16.msra.mxu0 %v922
        %1394 = vmatprep.subr.bf16.mxu0 %v917
        %1395 = vmatpush2.bf16.msra.mxu0 %v916
        %1396 = vmatprep.subr.bf16.mxu0 %v911
        %1397 = vmatpush2.bf16.msra.mxu0 %v910
        %1398 = vmatprep.subr.bf16.mxu0 %v905
        %1399 = vmatpush2.bf16.msra.mxu0 %v904
        %1400 = vmatprep.subr.bf16.mxu0 %v899
        %1401 = vmatpush2.bf16.msra.mxu0 %v898
        %1402 = vmatprep.mubr.bf16.mxu0 %v1269
        %1403 = vmatmul.mubr.bf16.gmra.mxu0 %v1268
        %v1404 = vpop.f32.mrf.mxu0
        %v1405 = vadd.f32 %v1364, %v1404
        %v1406 = vpop.f32.mrf.mxu0
        %v1407 = vadd.f32 %v1366, %v1406
        %v1408 = vpop.f32.mrf.mxu0
        %v1409 = vpop.f32.mrf.mxu0
        %1410 = vdwg.mxu0
        %1411 = vmatprep.subr.bf16.mxu0 %v989
        %1412 = vmatpush1.bf16.msra.mxu0 %v988
        %1413 = vmatprep.subr.bf16.mxu0 %v983
        %1414 = vmatpush1.bf16.msra.mxu0 %v982
        %1415 = vmatprep.subr.bf16.mxu0 %v977
        %1416 = vmatpush1.bf16.msra.mxu0 %v976
        %1417 = vmatprep.subr.bf16.mxu0 %v971
        %1418 = vmatpush1.bf16.msra.mxu0 %v970
        %1419 = vmatprep.subr.bf16.mxu0 %v965
        %1420 = vmatpush1.bf16.msra.mxu0 %v964
        %1421 = vmatprep.subr.bf16.mxu0 %v959
        %1422 = vmatpush1.bf16.msra.mxu0 %v958
        %1423 = vmatprep.subr.bf16.mxu0 %v953
        %1424 = vmatpush1.bf16.msra.mxu0 %v952
        %1425 = vmatprep.subr.bf16.mxu0 %v947
        %1426 = vmatpush1.bf16.msra.mxu0 %v946
        %1427 = vmatprep.subr.bf16.mxu0 %v1037
        %1428 = vmatpush2.bf16.msra.mxu0 %v1036
        %1429 = vmatprep.subr.bf16.mxu0 %v1031
        %1430 = vmatpush2.bf16.msra.mxu0 %v1030
        %1431 = vmatprep.subr.bf16.mxu0 %v1025
        %1432 = vmatpush2.bf16.msra.mxu0 %v1024
        %1433 = vmatprep.subr.bf16.mxu0 %v1019
        %1434 = vmatpush2.bf16.msra.mxu0 %v1018
        %1435 = vmatprep.subr.bf16.mxu0 %v1013
        %1436 = vmatpush2.bf16.msra.mxu0 %v1012
        %1437 = vmatprep.subr.bf16.mxu0 %v1007
        %1438 = vmatpush2.bf16.msra.mxu0 %v1006
        %1439 = vmatprep.subr.bf16.mxu0 %v1001
        %1440 = vmatpush2.bf16.msra.mxu0 %v1000
        %1441 = vmatprep.subr.bf16.mxu0 %v995
        %1442 = vmatpush2.bf16.msra.mxu0 %v994
        %1443 = vmatprep.mubr.bf16.mxu0 %v1271
        %1444 = vmatmul.mubr.bf16.gmra.mxu0 %v1270
        %v1445 = vpop.f32.mrf.mxu0
        %v1446 = vadd.f32 %v1405, %v1445
        %v1447 = vpop.f32.mrf.mxu0
        %v1448 = vadd.f32 %v1407, %v1447
        %v1449 = vpop.f32.mrf.mxu0
        %v1450 = vpop.f32.mrf.mxu0
        %1451 = vdwg.mxu0
        %1452 = vmatprep.subr.bf16.mxu0 %v1085
        %1453 = vmatpush1.bf16.msra.mxu0 %v1084
        %1454 = vmatprep.subr.bf16.mxu0 %v1079
        %1455 = vmatpush1.bf16.msra.mxu0 %v1078
        %1456 = vmatprep.subr.bf16.mxu0 %v1073
        %1457 = vmatpush1.bf16.msra.mxu0 %v1072
        %1458 = vmatprep.subr.bf16.mxu0 %v1067
        %1459 = vmatpush1.bf16.msra.mxu0 %v1066
        %1460 = vmatprep.subr.bf16.mxu0 %v1061
        %1461 = vmatpush1.bf16.msra.mxu0 %v1060
        %1462 = vmatprep.subr.bf16.mxu0 %v1055
        %1463 = vmatpush1.bf16.msra.mxu0 %v1054
        %1464 = vmatprep.subr.bf16.mxu0 %v1049
        %1465 = vmatpush1.bf16.msra.mxu0 %v1048
        %1466 = vmatprep.subr.bf16.mxu0 %v1043
        %1467 = vmatpush1.bf16.msra.mxu0 %v1042
        %1468 = vmatprep.subr.bf16.mxu0 %v1133
        %1469 = vmatpush2.bf16.msra.mxu0 %v1132
        %1470 = vmatprep.subr.bf16.mxu0 %v1127
        %1471 = vmatpush2.bf16.msra.mxu0 %v1126
        %1472 = vmatprep.subr.bf16.mxu0 %v1121
        %1473 = vmatpush2.bf16.msra.mxu0 %v1120
        %1474 = vmatprep.subr.bf16.mxu0 %v1115
        %1475 = vmatpush2.bf16.msra.mxu0 %v1114
        %1476 = vmatprep.subr.bf16.mxu0 %v1109
        %1477 = vmatpush2.bf16.msra.mxu0 %v1108
        %1478 = vmatprep.subr.bf16.mxu0 %v1103
        %1479 = vmatpush2.bf16.msra.mxu0 %v1102
        %1480 = vmatprep.subr.bf16.mxu0 %v1097
        %1481 = vmatpush2.bf16.msra.mxu0 %v1096
        %1482 = vmatprep.subr.bf16.mxu0 %v1091
        %1483 = vmatpush2.bf16.msra.mxu0 %v1090
        %1484 = vmatprep.mubr.bf16.mxu0 %v1273
        %1485 = vmatmul.mubr.bf16.gmra.mxu0 %v1272
        %v1486 = vpop.f32.mrf.mxu0
        %v1487 = vadd.f32 %v1446, %v1486
        %v1488 = vpop.f32.mrf.mxu0
        %v1489 = vadd.f32 %v1448, %v1488
        %v1490 = vpop.f32.mrf.mxu0
        %v1491 = vpop.f32.mrf.mxu0
        %1492 = vdwg.mxu0
        %1493 = vmatprep.subr.bf16.mxu0 %v1181
        %1494 = vmatpush1.bf16.msra.mxu0 %v1180
        %1495 = vmatprep.subr.bf16.mxu0 %v1175
        %1496 = vmatpush1.bf16.msra.mxu0 %v1174
        %1497 = vmatprep.subr.bf16.mxu0 %v1169
        %1498 = vmatpush1.bf16.msra.mxu0 %v1168
        %1499 = vmatprep.subr.bf16.mxu0 %v1163
        %1500 = vmatpush1.bf16.msra.mxu0 %v1162
        %1501 = vmatprep.subr.bf16.mxu0 %v1157
        %1502 = vmatpush1.bf16.msra.mxu0 %v1156
        %1503 = vmatprep.subr.bf16.mxu0 %v1151
        %1504 = vmatpush1.bf16.msra.mxu0 %v1150
        %1505 = vmatprep.subr.bf16.mxu0 %v1145
        %1506 = vmatpush1.bf16.msra.mxu0 %v1144
        %1507 = vmatprep.subr.bf16.mxu0 %v1139
        %1508 = vmatpush1.bf16.msra.mxu0 %v1138
        %1509 = vmatprep.subr.bf16.mxu0 %v1229
        %1510 = vmatpush2.bf16.msra.mxu0 %v1228
        %1511 = vmatprep.subr.bf16.mxu0 %v1223
        %1512 = vmatpush2.bf16.msra.mxu0 %v1222
        %1513 = vmatprep.subr.bf16.mxu0 %v1217
        %1514 = vmatpush2.bf16.msra.mxu0 %v1216
        %1515 = vmatprep.subr.bf16.mxu0 %v1211
        %1516 = vmatpush2.bf16.msra.mxu0 %v1210
        %1517 = vmatprep.subr.bf16.mxu0 %v1205
        %1518 = vmatpush2.bf16.msra.mxu0 %v1204
        %1519 = vmatprep.subr.bf16.mxu0 %v1199
        %1520 = vmatpush2.bf16.msra.mxu0 %v1198
        %1521 = vmatprep.subr.bf16.mxu0 %v1193
        %1522 = vmatpush2.bf16.msra.mxu0 %v1192
        %1523 = vmatprep.subr.bf16.mxu0 %v1187
        %1524 = vmatpush2.bf16.msra.mxu0 %v1186
        %1525 = vmatprep.mubr.bf16.mxu0 %v1275
        %1526 = vmatmul.mubr.bf16.gmra.mxu0 %v1274
        %v1527 = vpop.f32.mrf.mxu0
        %v1528 = vadd.f32 %v1487, %v1527
        %v1529 = vpop.f32.mrf.mxu0
        %v1530 = vadd.f32 %v1489, %v1529
        %v1531 = vpop.f32.mrf.mxu0
        %v1532 = vpop.f32.mrf.mxu0
        %1533 = vdwg.mxu0
        %1534 = vmatprep.subr.bf16.mxu0 %v703
        %1535 = vmatpush1.bf16.msra.mxu0 %v702
        %1536 = vmatprep.subr.bf16.mxu0 %v697
        %1537 = vmatpush1.bf16.msra.mxu0 %v696
        %1538 = vmatprep.subr.bf16.mxu0 %v691
        %1539 = vmatpush1.bf16.msra.mxu0 %v690
        %1540 = vmatprep.subr.bf16.mxu0 %v685
        %1541 = vmatpush1.bf16.msra.mxu0 %v684
        %1542 = vmatprep.subr.bf16.mxu0 %v679
        %1543 = vmatpush1.bf16.msra.mxu0 %v678
        %1544 = vmatprep.subr.bf16.mxu0 %v673
        %1545 = vmatpush1.bf16.msra.mxu0 %v672
        %1546 = vmatprep.subr.bf16.mxu0 %v667
        %1547 = vmatpush1.bf16.msra.mxu0 %v666
        %1548 = vmatprep.subr.bf16.mxu0 %v661
        %1549 = vmatpush1.bf16.msra.mxu0 %v660
        %1550 = vmatprep.subr.bf16.mxu0 %v751
        %1551 = vmatpush2.bf16.msra.mxu0 %v750
        %1552 = vmatprep.subr.bf16.mxu0 %v745
        %1553 = vmatpush2.bf16.msra.mxu0 %v744
        %1554 = vmatprep.subr.bf16.mxu0 %v739
        %1555 = vmatpush2.bf16.msra.mxu0 %v738
        %1556 = vmatprep.subr.bf16.mxu0 %v733
        %1557 = vmatpush2.bf16.msra.mxu0 %v732
        %1558 = vmatprep.subr.bf16.mxu0 %v727
        %1559 = vmatpush2.bf16.msra.mxu0 %v726
        %1560 = vmatprep.subr.bf16.mxu0 %v721
        %1561 = vmatpush2.bf16.msra.mxu0 %v720
        %1562 = vmatprep.subr.bf16.mxu0 %v715
        %1563 = vmatpush2.bf16.msra.mxu0 %v714
        %1564 = vmatprep.subr.bf16.mxu0 %v709
        %1565 = vmatpush2.bf16.msra.mxu0 %v708
        %1566 = vmatprep.mubr.bf16.mxu0 %v1265
        %1567 = vmatmul.mubr.bf16.gmra.mxu0 %v1264
        %v1568 = vpop.f32.mrf.mxu0
        %v1569 = vadd.f32 0.0, %v1568
        %v1570 = vpop.f32.mrf.mxu0
        %v1571 = vadd.f32 0.0, %v1570
        %v1572 = vpop.f32.mrf.mxu0
        %v1573 = vpop.f32.mrf.mxu0
        %1574 = vdwg.mxu0
        %1575 = vmatprep.subr.bf16.mxu0 %v799
        %1576 = vmatpush1.bf16.msra.mxu0 %v798
        %1577 = vmatprep.subr.bf16.mxu0 %v793
        %1578 = vmatpush1.bf16.msra.mxu0 %v792
        %1579 = vmatprep.subr.bf16.mxu0 %v787
        %1580 = vmatpush1.bf16.msra.mxu0 %v786
        %1581 = vmatprep.subr.bf16.mxu0 %v781
        %1582 = vmatpush1.bf16.msra.mxu0 %v780
        %1583 = vmatprep.subr.bf16.mxu0 %v775
        %1584 = vmatpush1.bf16.msra.mxu0 %v774
        %1585 = vmatprep.subr.bf16.mxu0 %v769
        %1586 = vmatpush1.bf16.msra.mxu0 %v768
        %1587 = vmatprep.subr.bf16.mxu0 %v763
        %1588 = vmatpush1.bf16.msra.mxu0 %v762
        %1589 = vmatprep.subr.bf16.mxu0 %v757
        %1590 = vmatpush1.bf16.msra.mxu0 %v756
        %1591 = vmatprep.subr.bf16.mxu0 %v847
        %1592 = vmatpush2.bf16.msra.mxu0 %v846
        %1593 = vmatprep.subr.bf16.mxu0 %v841
        %1594 = vmatpush2.bf16.msra.mxu0 %v840
        %1595 = vmatprep.subr.bf16.mxu0 %v835
        %1596 = vmatpush2.bf16.msra.mxu0 %v834
        %1597 = vmatprep.subr.bf16.mxu0 %v829
        %1598 = vmatpush2.bf16.msra.mxu0 %v828
        %1599 = vmatprep.subr.bf16.mxu0 %v823
        %1600 = vmatpush2.bf16.msra.mxu0 %v822
        %1601 = vmatprep.subr.bf16.mxu0 %v817
        %1602 = vmatpush2.bf16.msra.mxu0 %v816
        %1603 = vmatprep.subr.bf16.mxu0 %v811
        %1604 = vmatpush2.bf16.msra.mxu0 %v810
        %1605 = vmatprep.subr.bf16.mxu0 %v805
        %1606 = vmatpush2.bf16.msra.mxu0 %v804
        %1607 = vmatprep.mubr.bf16.mxu0 %v1267
        %1608 = vmatmul.mubr.bf16.gmra.mxu0 %v1266
        %v1609 = vpop.f32.mrf.mxu0
        %v1610 = vadd.f32 %v1569, %v1609
        %v1611 = vpop.f32.mrf.mxu0
        %v1612 = vadd.f32 %v1571, %v1611
        %v1613 = vpop.f32.mrf.mxu0
        %v1614 = vpop.f32.mrf.mxu0
        %1615 = vdwg.mxu0
        %1616 = vmatprep.subr.bf16.mxu0 %v895
        %1617 = vmatpush1.bf16.msra.mxu0 %v894
        %1618 = vmatprep.subr.bf16.mxu0 %v889
        %1619 = vmatpush1.bf16.msra.mxu0 %v888
        %1620 = vmatprep.subr.bf16.mxu0 %v883
        %1621 = vmatpush1.bf16.msra.mxu0 %v882
        %1622 = vmatprep.subr.bf16.mxu0 %v877
        %1623 = vmatpush1.bf16.msra.mxu0 %v876
        %1624 = vmatprep.subr.bf16.mxu0 %v871
        %1625 = vmatpush1.bf16.msra.mxu0 %v870
        %1626 = vmatprep.subr.bf16.mxu0 %v865
        %1627 = vmatpush1.bf16.msra.mxu0 %v864
        %1628 = vmatprep.subr.bf16.mxu0 %v859
        %1629 = vmatpush1.bf16.msra.mxu0 %v858
        %1630 = vmatprep.subr.bf16.mxu0 %v853
        %1631 = vmatpush1.bf16.msra.mxu0 %v852
        %1632 = vmatprep.subr.bf16.mxu0 %v943
        %1633 = vmatpush2.bf16.msra.mxu0 %v942
        %1634 = vmatprep.subr.bf16.mxu0 %v937
        %1635 = vmatpush2.bf16.msra.mxu0 %v936
        %1636 = vmatprep.subr.bf16.mxu0 %v931
        %1637 = vmatpush2.bf16.msra.mxu0 %v930
        %1638 = vmatprep.subr.bf16.mxu0 %v925
        %1639 = vmatpush2.bf16.msra.mxu0 %v924
        %1640 = vmatprep.subr.bf16.mxu0 %v919
        %1641 = vmatpush2.bf16.msra.mxu0 %v918
        %1642 = vmatprep.subr.bf16.mxu0 %v913
        %1643 = vmatpush2.bf16.msra.mxu0 %v912
        %1644 = vmatprep.subr.bf16.mxu0 %v907
        %1645 = vmatpush2.bf16.msra.mxu0 %v906
        %1646 = vmatprep.subr.bf16.mxu0 %v901
        %1647 = vmatpush2.bf16.msra.mxu0 %v900
        %1648 = vmatprep.mubr.bf16.mxu0 %v1269
        %1649 = vmatmul.mubr.bf16.gmra.mxu0 %v1268
        %v1650 = vpop.f32.mrf.mxu0
        %v1651 = vadd.f32 %v1610, %v1650
        %v1652 = vpop.f32.mrf.mxu0
        %v1653 = vadd.f32 %v1612, %v1652
        %v1654 = vpop.f32.mrf.mxu0
        %v1655 = vpop.f32.mrf.mxu0
        %1656 = vdwg.mxu0
        %1657 = vmatprep.subr.bf16.mxu0 %v991
        %1658 = vmatpush1.bf16.msra.mxu0 %v990
        %1659 = vmatprep.subr.bf16.mxu0 %v985
        %1660 = vmatpush1.bf16.msra.mxu0 %v984
        %1661 = vmatprep.subr.bf16.mxu0 %v979
        %1662 = vmatpush1.bf16.msra.mxu0 %v978
        %1663 = vmatprep.subr.bf16.mxu0 %v973
        %1664 = vmatpush1.bf16.msra.mxu0 %v972
        %1665 = vmatprep.subr.bf16.mxu0 %v967
        %1666 = vmatpush1.bf16.msra.mxu0 %v966
        %1667 = vmatprep.subr.bf16.mxu0 %v961
        %1668 = vmatpush1.bf16.msra.mxu0 %v960
        %1669 = vmatprep.subr.bf16.mxu0 %v955
        %1670 = vmatpush1.bf16.msra.mxu0 %v954
        %1671 = vmatprep.subr.bf16.mxu0 %v949
        %1672 = vmatpush1.bf16.msra.mxu0 %v948
        %1673 = vmatprep.subr.bf16.mxu0 %v1039
        %1674 = vmatpush2.bf16.msra.mxu0 %v1038
        %1675 = vmatprep.subr.bf16.mxu0 %v1033
        %1676 = vmatpush2.bf16.msra.mxu0 %v1032
        %1677 = vmatprep.subr.bf16.mxu0 %v1027
        %1678 = vmatpush2.bf16.msra.mxu0 %v1026
        %1679 = vmatprep.subr.bf16.mxu0 %v1021
        %1680 = vmatpush2.bf16.msra.mxu0 %v1020
        %1681 = vmatprep.subr.bf16.mxu0 %v1015
        %1682 = vmatpush2.bf16.msra.mxu0 %v1014
        %1683 = vmatprep.subr.bf16.mxu0 %v1009
        %1684 = vmatpush2.bf16.msra.mxu0 %v1008
        %1685 = vmatprep.subr.bf16.mxu0 %v1003
        %1686 = vmatpush2.bf16.msra.mxu0 %v1002
        %1687 = vmatprep.subr.bf16.mxu0 %v997
        %1688 = vmatpush2.bf16.msra.mxu0 %v996
        %1689 = vmatprep.mubr.bf16.mxu0 %v1271
        %1690 = vmatmul.mubr.bf16.gmra.mxu0 %v1270
        %v1691 = vpop.f32.mrf.mxu0
        %v1692 = vadd.f32 %v1651, %v1691
        %v1693 = vpop.f32.mrf.mxu0
        %v1694 = vadd.f32 %v1653, %v1693
        %v1695 = vpop.f32.mrf.mxu0
        %v1696 = vpop.f32.mrf.mxu0
        %1697 = vdwg.mxu0
        %1698 = vmatprep.subr.bf16.mxu0 %v1087
        %1699 = vmatpush1.bf16.msra.mxu0 %v1086
        %1700 = vmatprep.subr.bf16.mxu0 %v1081
        %1701 = vmatpush1.bf16.msra.mxu0 %v1080
        %1702 = vmatprep.subr.bf16.mxu0 %v1075
        %1703 = vmatpush1.bf16.msra.mxu0 %v1074
        %1704 = vmatprep.subr.bf16.mxu0 %v1069
        %1705 = vmatpush1.bf16.msra.mxu0 %v1068
        %1706 = vmatprep.subr.bf16.mxu0 %v1063
        %1707 = vmatpush1.bf16.msra.mxu0 %v1062
        %1708 = vmatprep.subr.bf16.mxu0 %v1057
        %1709 = vmatpush1.bf16.msra.mxu0 %v1056
        %1710 = vmatprep.subr.bf16.mxu0 %v1051
        %1711 = vmatpush1.bf16.msra.mxu0 %v1050
        %1712 = vmatprep.subr.bf16.mxu0 %v1045
        %1713 = vmatpush1.bf16.msra.mxu0 %v1044
        %1714 = vmatprep.subr.bf16.mxu0 %v1135
        %1715 = vmatpush2.bf16.msra.mxu0 %v1134
        %1716 = vmatprep.subr.bf16.mxu0 %v1129
        %1717 = vmatpush2.bf16.msra.mxu0 %v1128
        %1718 = vmatprep.subr.bf16.mxu0 %v1123
        %1719 = vmatpush2.bf16.msra.mxu0 %v1122
        %1720 = vmatprep.subr.bf16.mxu0 %v1117
        %1721 = vmatpush2.bf16.msra.mxu0 %v1116
        %1722 = vmatprep.subr.bf16.mxu0 %v1111
        %1723 = vmatpush2.bf16.msra.mxu0 %v1110
        %1724 = vmatprep.subr.bf16.mxu0 %v1105
        %1725 = vmatpush2.bf16.msra.mxu0 %v1104
        %1726 = vmatprep.subr.bf16.mxu0 %v1099
        %1727 = vmatpush2.bf16.msra.mxu0 %v1098
        %1728 = vmatprep.subr.bf16.mxu0 %v1093
        %1729 = vmatpush2.bf16.msra.mxu0 %v1092
        %1730 = vmatprep.mubr.bf16.mxu0 %v1273
        %1731 = vmatmul.mubr.bf16.gmra.mxu0 %v1272
        %v1732 = vpop.f32.mrf.mxu0
        %v1733 = vadd.f32 %v1692, %v1732
        %v1734 = vpop.f32.mrf.mxu0
        %v1735 = vadd.f32 %v1694, %v1734
        %v1736 = vpop.f32.mrf.mxu0
        %v1737 = vpop.f32.mrf.mxu0
        %1738 = vdwg.mxu0
        %1739 = vmatprep.subr.bf16.mxu0 %v1183
        %1740 = vmatpush1.bf16.msra.mxu0 %v1182
        %1741 = vmatprep.subr.bf16.mxu0 %v1177
        %1742 = vmatpush1.bf16.msra.mxu0 %v1176
        %1743 = vmatprep.subr.bf16.mxu0 %v1171
        %1744 = vmatpush1.bf16.msra.mxu0 %v1170
        %1745 = vmatprep.subr.bf16.mxu0 %v1165
        %1746 = vmatpush1.bf16.msra.mxu0 %v1164
        %1747 = vmatprep.subr.bf16.mxu0 %v1159
        %1748 = vmatpush1.bf16.msra.mxu0 %v1158
        %1749 = vmatprep.subr.bf16.mxu0 %v1153
        %1750 = vmatpush1.bf16.msra.mxu0 %v1152
        %1751 = vmatprep.subr.bf16.mxu0 %v1147
        %1752 = vmatpush1.bf16.msra.mxu0 %v1146
        %1753 = vmatprep.subr.bf16.mxu0 %v1141
        %1754 = vmatpush1.bf16.msra.mxu0 %v1140
        %1755 = vmatprep.subr.bf16.mxu0 %v1231
        %1756 = vmatpush2.bf16.msra.mxu0 %v1230
        %1757 = vmatprep.subr.bf16.mxu0 %v1225
        %1758 = vmatpush2.bf16.msra.mxu0 %v1224
        %1759 = vmatprep.subr.bf16.mxu0 %v1219
        %1760 = vmatpush2.bf16.msra.mxu0 %v1218
        %1761 = vmatprep.subr.bf16.mxu0 %v1213
        %1762 = vmatpush2.bf16.msra.mxu0 %v1212
        %1763 = vmatprep.subr.bf16.mxu0 %v1207
        %1764 = vmatpush2.bf16.msra.mxu0 %v1206
        %1765 = vmatprep.subr.bf16.mxu0 %v1201
        %1766 = vmatpush2.bf16.msra.mxu0 %v1200
        %1767 = vmatprep.subr.bf16.mxu0 %v1195
        %1768 = vmatpush2.bf16.msra.mxu0 %v1194
        %1769 = vmatprep.subr.bf16.mxu0 %v1189
        %1770 = vmatpush2.bf16.msra.mxu0 %v1188
        %1771 = vmatprep.mubr.bf16.mxu0 %v1275
        %1772 = vmatmul.mubr.bf16.gmra.mxu0 %v1274
        %v1773 = vpop.f32.mrf.mxu0
        %v1774 = vadd.f32 %v1733, %v1773
        %v1775 = vpop.f32.mrf.mxu0
        %v1776 = vadd.f32 %v1735, %v1775
        %v1777 = vpop.f32.mrf.mxu0
        %v1778 = vpop.f32.mrf.mxu0
        %1779 = vdwg.mxu0
        %1780 = vmatprep.subr.bf16.mxu0 %v705
        %1781 = vmatpush1.bf16.msra.mxu0 %v704
        %1782 = vmatprep.subr.bf16.mxu0 %v699
        %1783 = vmatpush1.bf16.msra.mxu0 %v698
        %1784 = vmatprep.subr.bf16.mxu0 %v693
        %1785 = vmatpush1.bf16.msra.mxu0 %v692
        %1786 = vmatprep.subr.bf16.mxu0 %v687
        %1787 = vmatpush1.bf16.msra.mxu0 %v686
        %1788 = vmatprep.subr.bf16.mxu0 %v681
        %1789 = vmatpush1.bf16.msra.mxu0 %v680
        %1790 = vmatprep.subr.bf16.mxu0 %v675
        %1791 = vmatpush1.bf16.msra.mxu0 %v674
        %1792 = vmatprep.subr.bf16.mxu0 %v669
        %1793 = vmatpush1.bf16.msra.mxu0 %v668
        %1794 = vmatprep.subr.bf16.mxu0 %v663
        %1795 = vmatpush1.bf16.msra.mxu0 %v662
        %1796 = vmatprep.subr.bf16.mxu0 %v753
        %1797 = vmatpush2.bf16.msra.mxu0 %v752
        %1798 = vmatprep.subr.bf16.mxu0 %v747
        %1799 = vmatpush2.bf16.msra.mxu0 %v746
        %1800 = vmatprep.subr.bf16.mxu0 %v741
        %1801 = vmatpush2.bf16.msra.mxu0 %v740
        %1802 = vmatprep.subr.bf16.mxu0 %v735
        %1803 = vmatpush2.bf16.msra.mxu0 %v734
        %1804 = vmatprep.subr.bf16.mxu0 %v729
        %1805 = vmatpush2.bf16.msra.mxu0 %v728
        %1806 = vmatprep.subr.bf16.mxu0 %v723
        %1807 = vmatpush2.bf16.msra.mxu0 %v722
        %1808 = vmatprep.subr.bf16.mxu0 %v717
        %1809 = vmatpush2.bf16.msra.mxu0 %v716
        %1810 = vmatprep.subr.bf16.mxu0 %v711
        %1811 = vmatpush2.bf16.msra.mxu0 %v710
        %1812 = vmatprep.mubr.bf16.mxu0 %v1265
        %1813 = vmatmul.mubr.bf16.gmra.mxu0 %v1264
        %v1814 = vpop.f32.mrf.mxu0
        %v1815 = vadd.f32 0.0, %v1814
        %v1816 = vpop.f32.mrf.mxu0
        %v1817 = vadd.f32 0.0, %v1816
        %v1818 = vpop.f32.mrf.mxu0
        %v1819 = vpop.f32.mrf.mxu0
        %1820 = vdwg.mxu0
        %1821 = vmatprep.subr.bf16.mxu0 %v801
        %1822 = vmatpush1.bf16.msra.mxu0 %v800
        %1823 = vmatprep.subr.bf16.mxu0 %v795
        %1824 = vmatpush1.bf16.msra.mxu0 %v794
        %1825 = vmatprep.subr.bf16.mxu0 %v789
        %1826 = vmatpush1.bf16.msra.mxu0 %v788
        %1827 = vmatprep.subr.bf16.mxu0 %v783
        %1828 = vmatpush1.bf16.msra.mxu0 %v782
        %1829 = vmatprep.subr.bf16.mxu0 %v777
        %1830 = vmatpush1.bf16.msra.mxu0 %v776
        %1831 = vmatprep.subr.bf16.mxu0 %v771
        %1832 = vmatpush1.bf16.msra.mxu0 %v770
        %1833 = vmatprep.subr.bf16.mxu0 %v765
        %1834 = vmatpush1.bf16.msra.mxu0 %v764
        %1835 = vmatprep.subr.bf16.mxu0 %v759
        %1836 = vmatpush1.bf16.msra.mxu0 %v758
        %1837 = vmatprep.subr.bf16.mxu0 %v849
        %1838 = vmatpush2.bf16.msra.mxu0 %v848
        %1839 = vmatprep.subr.bf16.mxu0 %v843
        %1840 = vmatpush2.bf16.msra.mxu0 %v842
        %1841 = vmatprep.subr.bf16.mxu0 %v837
        %1842 = vmatpush2.bf16.msra.mxu0 %v836
        %1843 = vmatprep.subr.bf16.mxu0 %v831
        %1844 = vmatpush2.bf16.msra.mxu0 %v830
        %1845 = vmatprep.subr.bf16.mxu0 %v825
        %1846 = vmatpush2.bf16.msra.mxu0 %v824
        %1847 = vmatprep.subr.bf16.mxu0 %v819
        %1848 = vmatpush2.bf16.msra.mxu0 %v818
        %1849 = vmatprep.subr.bf16.mxu0 %v813
        %1850 = vmatpush2.bf16.msra.mxu0 %v812
        %1851 = vmatprep.subr.bf16.mxu0 %v807
        %1852 = vmatpush2.bf16.msra.mxu0 %v806
        %1853 = vmatprep.mubr.bf16.mxu0 %v1267
        %1854 = vmatmul.mubr.bf16.gmra.mxu0 %v1266
        %v1855 = vpop.f32.mrf.mxu0
        %v1856 = vadd.f32 %v1815, %v1855
        %v1857 = vpop.f32.mrf.mxu0
        %v1858 = vadd.f32 %v1817, %v1857
        %v1859 = vpop.f32.mrf.mxu0
        %v1860 = vpop.f32.mrf.mxu0
        %1861 = vdwg.mxu0
        %1862 = vmatprep.subr.bf16.mxu0 %v897
        %1863 = vmatpush1.bf16.msra.mxu0 %v896
        %1864 = vmatprep.subr.bf16.mxu0 %v891
        %1865 = vmatpush1.bf16.msra.mxu0 %v890
        %1866 = vmatprep.subr.bf16.mxu0 %v885
        %1867 = vmatpush1.bf16.msra.mxu0 %v884
        %1868 = vmatprep.subr.bf16.mxu0 %v879
        %1869 = vmatpush1.bf16.msra.mxu0 %v878
        %1870 = vmatprep.subr.bf16.mxu0 %v873
        %1871 = vmatpush1.bf16.msra.mxu0 %v872
        %1872 = vmatprep.subr.bf16.mxu0 %v867
        %1873 = vmatpush1.bf16.msra.mxu0 %v866
        %1874 = vmatprep.subr.bf16.mxu0 %v861
        %1875 = vmatpush1.bf16.msra.mxu0 %v860
        %1876 = vmatprep.subr.bf16.mxu0 %v855
        %1877 = vmatpush1.bf16.msra.mxu0 %v854
        %1878 = vmatprep.subr.bf16.mxu0 %v945
        %1879 = vmatpush2.bf16.msra.mxu0 %v944
        %1880 = vmatprep.subr.bf16.mxu0 %v939
        %1881 = vmatpush2.bf16.msra.mxu0 %v938
        %1882 = vmatprep.subr.bf16.mxu0 %v933
        %1883 = vmatpush2.bf16.msra.mxu0 %v932
        %1884 = vmatprep.subr.bf16.mxu0 %v927
        %1885 = vmatpush2.bf16.msra.mxu0 %v926
        %1886 = vmatprep.subr.bf16.mxu0 %v921
        %1887 = vmatpush2.bf16.msra.mxu0 %v920
        %1888 = vmatprep.subr.bf16.mxu0 %v915
        %1889 = vmatpush2.bf16.msra.mxu0 %v914
        %1890 = vmatprep.subr.bf16.mxu0 %v909
        %1891 = vmatpush2.bf16.msra.mxu0 %v908
        %1892 = vmatprep.subr.bf16.mxu0 %v903
        %1893 = vmatpush2.bf16.msra.mxu0 %v902
        %1894 = vmatprep.mubr.bf16.mxu0 %v1269
        %1895 = vmatmul.mubr.bf16.gmra.mxu0 %v1268
        %v1896 = vpop.f32.mrf.mxu0
        %v1897 = vadd.f32 %v1856, %v1896
        %v1898 = vpop.f32.mrf.mxu0
        %v1899 = vadd.f32 %v1858, %v1898
        %v1900 = vpop.f32.mrf.mxu0
        %v1901 = vpop.f32.mrf.mxu0
        %1902 = vdwg.mxu0
        %1903 = vmatprep.subr.bf16.mxu0 %v993
        %1904 = vmatpush1.bf16.msra.mxu0 %v992
        %1905 = vmatprep.subr.bf16.mxu0 %v987
        %1906 = vmatpush1.bf16.msra.mxu0 %v986
        %1907 = vmatprep.subr.bf16.mxu0 %v981
        %1908 = vmatpush1.bf16.msra.mxu0 %v980
        %1909 = vmatprep.subr.bf16.mxu0 %v975
        %1910 = vmatpush1.bf16.msra.mxu0 %v974
        %1911 = vmatprep.subr.bf16.mxu0 %v969
        %1912 = vmatpush1.bf16.msra.mxu0 %v968
        %1913 = vmatprep.subr.bf16.mxu0 %v963
        %1914 = vmatpush1.bf16.msra.mxu0 %v962
        %1915 = vmatprep.subr.bf16.mxu0 %v957
        %1916 = vmatpush1.bf16.msra.mxu0 %v956
        %1917 = vmatprep.subr.bf16.mxu0 %v951
        %1918 = vmatpush1.bf16.msra.mxu0 %v950
        %1919 = vmatprep.subr.bf16.mxu0 %v1041
        %1920 = vmatpush2.bf16.msra.mxu0 %v1040
        %1921 = vmatprep.subr.bf16.mxu0 %v1035
        %1922 = vmatpush2.bf16.msra.mxu0 %v1034
        %1923 = vmatprep.subr.bf16.mxu0 %v1029
        %1924 = vmatpush2.bf16.msra.mxu0 %v1028
        %1925 = vmatprep.subr.bf16.mxu0 %v1023
        %1926 = vmatpush2.bf16.msra.mxu0 %v1022
        %1927 = vmatprep.subr.bf16.mxu0 %v1017
        %1928 = vmatpush2.bf16.msra.mxu0 %v1016
        %1929 = vmatprep.subr.bf16.mxu0 %v1011
        %1930 = vmatpush2.bf16.msra.mxu0 %v1010
        %1931 = vmatprep.subr.bf16.mxu0 %v1005
        %1932 = vmatpush2.bf16.msra.mxu0 %v1004
        %1933 = vmatprep.subr.bf16.mxu0 %v999
        %1934 = vmatpush2.bf16.msra.mxu0 %v998
        %1935 = vmatprep.mubr.bf16.mxu0 %v1271
        %1936 = vmatmul.mubr.bf16.gmra.mxu0 %v1270
        %v1937 = vpop.f32.mrf.mxu0
        %v1938 = vadd.f32 %v1897, %v1937
        %v1939 = vpop.f32.mrf.mxu0
        %v1940 = vadd.f32 %v1899, %v1939
        %v1941 = vpop.f32.mrf.mxu0
        %v1942 = vpop.f32.mrf.mxu0
        %1943 = vdwg.mxu0
        %1944 = vmatprep.subr.bf16.mxu0 %v1089
        %1945 = vmatpush1.bf16.msra.mxu0 %v1088
        %1946 = vmatprep.subr.bf16.mxu0 %v1083
        %1947 = vmatpush1.bf16.msra.mxu0 %v1082
        %1948 = vmatprep.subr.bf16.mxu0 %v1077
        %1949 = vmatpush1.bf16.msra.mxu0 %v1076
        %1950 = vmatprep.subr.bf16.mxu0 %v1071
        %1951 = vmatpush1.bf16.msra.mxu0 %v1070
        %1952 = vmatprep.subr.bf16.mxu0 %v1065
        %1953 = vmatpush1.bf16.msra.mxu0 %v1064
        %1954 = vmatprep.subr.bf16.mxu0 %v1059
        %1955 = vmatpush1.bf16.msra.mxu0 %v1058
        %1956 = vmatprep.subr.bf16.mxu0 %v1053
        %1957 = vmatpush1.bf16.msra.mxu0 %v1052
        %1958 = vmatprep.subr.bf16.mxu0 %v1047
        %1959 = vmatpush1.bf16.msra.mxu0 %v1046
        %1960 = vmatprep.subr.bf16.mxu0 %v1137
        %1961 = vmatpush2.bf16.msra.mxu0 %v1136
        %1962 = vmatprep.subr.bf16.mxu0 %v1131
        %1963 = vmatpush2.bf16.msra.mxu0 %v1130
        %1964 = vmatprep.subr.bf16.mxu0 %v1125
        %1965 = vmatpush2.bf16.msra.mxu0 %v1124
        %1966 = vmatprep.subr.bf16.mxu0 %v1119
        %1967 = vmatpush2.bf16.msra.mxu0 %v1118
        %1968 = vmatprep.subr.bf16.mxu0 %v1113
        %1969 = vmatpush2.bf16.msra.mxu0 %v1112
        %1970 = vmatprep.subr.bf16.mxu0 %v1107
        %1971 = vmatpush2.bf16.msra.mxu0 %v1106
        %1972 = vmatprep.subr.bf16.mxu0 %v1101
        %1973 = vmatpush2.bf16.msra.mxu0 %v1100
        %1974 = vmatprep.subr.bf16.mxu0 %v1095
        %1975 = vmatpush2.bf16.msra.mxu0 %v1094
        %1976 = vmatprep.mubr.bf16.mxu0 %v1273
        %1977 = vmatmul.mubr.bf16.gmra.mxu0 %v1272
        %v1978 = vpop.f32.mrf.mxu0
        %v1979 = vadd.f32 %v1938, %v1978
        %v1980 = vpop.f32.mrf.mxu0
        %v1981 = vadd.f32 %v1940, %v1980
        %v1982 = vpop.f32.mrf.mxu0
        %v1983 = vpop.f32.mrf.mxu0
        %1984 = vdwg.mxu0
        %1985 = vmatprep.subr.bf16.mxu0 %v1185
        %1986 = vmatpush1.bf16.msra.mxu0 %v1184
        %1987 = vmatprep.subr.bf16.mxu0 %v1179
        %1988 = vmatpush1.bf16.msra.mxu0 %v1178
        %1989 = vmatprep.subr.bf16.mxu0 %v1173
        %1990 = vmatpush1.bf16.msra.mxu0 %v1172
        %1991 = vmatprep.subr.bf16.mxu0 %v1167
        %1992 = vmatpush1.bf16.msra.mxu0 %v1166
        %1993 = vmatprep.subr.bf16.mxu0 %v1161
        %1994 = vmatpush1.bf16.msra.mxu0 %v1160
        %1995 = vmatprep.subr.bf16.mxu0 %v1155
        %1996 = vmatpush1.bf16.msra.mxu0 %v1154
        %1997 = vmatprep.subr.bf16.mxu0 %v1149
        %1998 = vmatpush1.bf16.msra.mxu0 %v1148
        %1999 = vmatprep.subr.bf16.mxu0 %v1143
        %2000 = vmatpush1.bf16.msra.mxu0 %v1142
        %2001 = vmatprep.subr.bf16.mxu0 %v1233
        %2002 = vmatpush2.bf16.msra.mxu0 %v1232
        %2003 = vmatprep.subr.bf16.mxu0 %v1227
        %2004 = vmatpush2.bf16.msra.mxu0 %v1226
        %2005 = vmatprep.subr.bf16.mxu0 %v1221
        %2006 = vmatpush2.bf16.msra.mxu0 %v1220
        %2007 = vmatprep.subr.bf16.mxu0 %v1215
        %2008 = vmatpush2.bf16.msra.mxu0 %v1214
        %2009 = vmatprep.subr.bf16.mxu0 %v1209
        %2010 = vmatpush2.bf16.msra.mxu0 %v1208
        %2011 = vmatprep.subr.bf16.mxu0 %v1203
        %2012 = vmatpush2.bf16.msra.mxu0 %v1202
        %2013 = vmatprep.subr.bf16.mxu0 %v1197
        %2014 = vmatpush2.bf16.msra.mxu0 %v1196
        %2015 = vmatprep.subr.bf16.mxu0 %v1191
        %2016 = vmatpush2.bf16.msra.mxu0 %v1190
        %2017 = vmatprep.mubr.bf16.mxu0 %v1275
        %2018 = vmatmul.mubr.bf16.gmra.mxu0 %v1274
        %v2019 = vpop.f32.mrf.mxu0
        %v2020 = vadd.f32 %v1979, %v2019
        %v2021 = vpop.f32.mrf.mxu0
        %v2022 = vadd.f32 %v1981, %v2021
        %v2023 = vpop.f32.mrf.mxu0
        %v2024 = vpop.f32.mrf.mxu0
        %2025 = vdwg.mxu0
        %v2026 = vadd.f32 %v1234, %v1528
        %v2027 = vadd.f32 %v1235, %v1530
        %v2028 = vadd.f32 %v1236, %v1774
        %v2029 = vadd.f32 %v1237, %v1776
        %v2030 = vadd.f32 %v1238, %v2020
        %v2031 = vadd.f32 %v1239, %v2022
        %2032 = vst [vmem:[#allocation2] sm:$0xff] %v2026
        %2033 = vst [vmem:[#allocation2 + $0x8] sm:$0xff] %v2027
        %2034 = vst [vmem:[#allocation2 + $0x10] sm:$0xff] %v2028
        %2035 = vst [vmem:[#allocation2 + $0x18] sm:$0xff] %v2029
        %2036 = vst [vmem:[#allocation2 + $0x20] sm:$0xff] %v2030
        %2037 = vst [vmem:[#allocation2 + $0x28] sm:$0xff] %v2031
        %p2038 = scmp.eq.s32.totalorder %s25, 1
        // Predicated region
        $region69: #{mlp_forward.1} parent=43 // pred_check
          %p2039 = pneg %p2038
        $region70: #{mlp_forward.1} parent=43 // pred_check_branch
          %2041 = sbr.rel (%p2039) target = $region72
        $region71: #{mlp_forward.1} parent=43 // pred_region
          %v2042 = vld [vmem:[#allocation2] sm:$0xff]
          %v2043 = vld [vmem:[#allocation2 + $0x8] sm:$0xff]
          %v2044 = vld [vmem:[#allocation2 + $0x10] sm:$0xff]
          %v2045 = vld [vmem:[#allocation2 + $0x18] sm:$0xff]
          %v2046 = vld [vmem:[#allocation2 + $0x20] sm:$0xff]
          %v2047 = vld [vmem:[#allocation2 + $0x28] sm:$0xff]
          %v2048 = vld [vmem:[#allocation6] sm:$0x3f]
          %v2050 = vlaneseq
          %v2051 = vshrl.u32 %v2050, 7
          %v2052 = vsub.s32 0, %v2051
          %v2053 = vrot.slane %v2048, %v2052
          %v2054 = vlaneseq
          %v2055 = vshrl.u32 %v2054, 7
          %v2056 = vsub.s32 1, %v2055
          %v2057 = vrot.slane %v2048, %v2056
          %v2058 = vlaneseq
          %v2059 = vshrl.u32 %v2058, 7
          %v2060 = vsub.s32 2, %v2059
          %v2061 = vrot.slane %v2048, %v2060
          %v2062 = vlaneseq
          %v2063 = vshrl.u32 %v2062, 7
          %v2064 = vsub.s32 3, %v2063
          %v2065 = vrot.slane %v2048, %v2064
          %v2066 = vlaneseq
          %v2067 = vshrl.u32 %v2066, 7
          %v2068 = vsub.s32 4, %v2067
          %v2069 = vrot.slane %v2048, %v2068
          %v2070 = vlaneseq
          %v2071 = vshrl.u32 %v2070, 7
          %v2072 = vsub.s32 5, %v2071
          %v2073 = vrot.slane %v2048, %v2072
          %v2080 = vmul.f32 %v2042, %v2053
          %v2081 = vmul.f32 %v2043, %v2057
          %v2082 = vmul.f32 %v2044, %v2061
          %v2083 = vmul.f32 %v2045, %v2065
          %v2084 = vmul.f32 %v2046, %v2069
          %v2085 = vmul.f32 %v2047, %v2073
          %v2086 = vld [vmem:[#allocation8] sm:$0x3f]
          %v2088 = vlaneseq
          %v2089 = vshrl.u32 %v2088, 7
          %v2090 = vsub.s32 0, %v2089
          %v2091 = vrot.slane %v2086, %v2090
          %v2092 = vlaneseq
          %v2093 = vshrl.u32 %v2092, 7
          %v2094 = vsub.s32 1, %v2093
          %v2095 = vrot.slane %v2086, %v2094
          %v2096 = vlaneseq
          %v2097 = vshrl.u32 %v2096, 7
          %v2098 = vsub.s32 2, %v2097
          %v2099 = vrot.slane %v2086, %v2098
          %v2100 = vlaneseq
          %v2101 = vshrl.u32 %v2100, 7
          %v2102 = vsub.s32 3, %v2101
          %v2103 = vrot.slane %v2086, %v2102
          %v2104 = vlaneseq
          %v2105 = vshrl.u32 %v2104, 7
          %v2106 = vsub.s32 4, %v2105
          %v2107 = vrot.slane %v2086, %v2106
          %v2108 = vlaneseq
          %v2109 = vshrl.u32 %v2108, 7
          %v2110 = vsub.s32 5, %v2109
          %v2111 = vrot.slane %v2086, %v2110
          %v2118 = vadd.f32 %v2080, %v2091
          %v2119 = vadd.f32 %v2081, %v2095
          %v2120 = vadd.f32 %v2082, %v2099
          %v2121 = vadd.f32 %v2083, %v2103
          %v2122 = vadd.f32 %v2084, %v2107
          %v2123 = vadd.f32 %v2085, %v2111
          %v2124 = vmax.f32 %v2118, 0.0
          %v2125 = vmax.f32 %v2119, 0.0
          %v2126 = vmax.f32 %v2120, 0.0
          %v2127 = vmax.f32 %v2121, 0.0
          %v2128 = vmax.f32 %v2122, 0.0
          %v2129 = vmax.f32 %v2123, 0.0
          %v2130 = vpack.c.bf16 %v2124, %v2124
          %v2131 = vpack.c.bf16 %v2125, %v2125
          %v2132 = vpack.c.bf16 %v2126, %v2126
          %v2133 = vpack.c.bf16 %v2127, %v2127
          %v2134 = vpack.c.bf16 %v2128, %v2128
          %v2135 = vpack.c.bf16 %v2129, %v2129
          %v2136 = vld [vmem:[#allocation9] sm:$0xf]
          %v2137 = vld [vmem:[#allocation9 + $0x4] sm:$0xf]
          %v2138 = vld [vmem:[#allocation9 + $0x8] sm:$0xf]
          %v2139 = vld [vmem:[#allocation9 + $0xc] sm:$0xf]
          %v2140 = vld [vmem:[#allocation9 + $0x10] sm:$0xf]
          %v2141 = vld [vmem:[#allocation9 + $0x14] sm:$0xf]
          %v2142 = vld [vmem:[#allocation9 + $0x18] sm:$0xf]
          %v2143 = vld [vmem:[#allocation9 + $0x1c] sm:$0xf]
          %v2144 = vld [vmem:[#allocation9 + $0x20] sm:$0xf]
          %v2145 = vld [vmem:[#allocation9 + $0x24] sm:$0xf]
          %v2146 = vld [vmem:[#allocation9 + $0x28] sm:$0xf]
          %v2147 = vld [vmem:[#allocation9 + $0x2c] sm:$0xf]
          %v2148 = vld [vmem:[#allocation9 + $0x30] sm:$0xf]
          %v2149 = vld [vmem:[#allocation9 + $0x34] sm:$0xf]
          %v2150 = vld [vmem:[#allocation9 + $0x38] sm:$0xf]
          %v2151 = vld [vmem:[#allocation9 + $0x3c] sm:$0xf]
          %v2152 = vld [vmem:[#allocation9 + $0x40] sm:$0xf]
          %v2153 = vld [vmem:[#allocation9 + $0x44] sm:$0xf]
          %v2154 = vld [vmem:[#allocation9 + $0x48] sm:$0xf]
          %v2155 = vld [vmem:[#allocation9 + $0x4c] sm:$0xf]
          %v2156 = vld [vmem:[#allocation9 + $0x50] sm:$0xf]
          %v2157 = vld [vmem:[#allocation9 + $0x54] sm:$0xf]
          %v2158 = vld [vmem:[#allocation9 + $0x58] sm:$0xf]
          %v2159 = vld [vmem:[#allocation9 + $0x5c] sm:$0xf]
          %v2160 = vld [vmem:[#allocation9 + $0x60] sm:$0xf]
          %v2161 = vld [vmem:[#allocation9 + $0x64] sm:$0xf]
          %v2162 = vld [vmem:[#allocation9 + $0x68] sm:$0xf]
          %v2163 = vld [vmem:[#allocation9 + $0x6c] sm:$0xf]
          %v2164 = vld [vmem:[#allocation9 + $0x70] sm:$0xf]
          %v2165 = vld [vmem:[#allocation9 + $0x74] sm:$0xf]
          %v2166 = vld [vmem:[#allocation9 + $0x78] sm:$0xf]
          %v2167 = vld [vmem:[#allocation9 + $0x7c] sm:$0xf]
          %v2168 = vld [vmem:[#allocation9 + $0x80] sm:$0xf]
          %v2169 = vld [vmem:[#allocation9 + $0x84] sm:$0xf]
          %v2170 = vld [vmem:[#allocation9 + $0x88] sm:$0xf]
          %v2171 = vld [vmem:[#allocation9 + $0x8c] sm:$0xf]
          %v2172 = vld [vmem:[#allocation9 + $0x90] sm:$0xf]
          %v2173 = vld [vmem:[#allocation9 + $0x94] sm:$0xf]
          %v2174 = vld [vmem:[#allocation9 + $0x98] sm:$0xf]
          %v2175 = vld [vmem:[#allocation9 + $0x9c] sm:$0xf]
          %v2176 = vld [vmem:[#allocation9 + $0xa0] sm:$0xf]
          %v2177 = vld [vmem:[#allocation9 + $0xa4] sm:$0xf]
          %v2178 = vld [vmem:[#allocation9 + $0xa8] sm:$0xf]
          %v2179 = vld [vmem:[#allocation9 + $0xac] sm:$0xf]
          %v2180 = vld [vmem:[#allocation9 + $0xb0] sm:$0xf]
          %v2181 = vld [vmem:[#allocation9 + $0xb4] sm:$0xf]
          %v2182 = vld [vmem:[#allocation9 + $0xb8] sm:$0xf]
          %v2183 = vld [vmem:[#allocation9 + $0xbc] sm:$0xf]
          %v2184 = vld [vmem:[#allocation9 + $0xc0] sm:$0xf]
          %v2185 = vld [vmem:[#allocation9 + $0xc4] sm:$0xf]
          %v2186 = vld [vmem:[#allocation9 + $0xc8] sm:$0xf]
          %v2187 = vld [vmem:[#allocation9 + $0xcc] sm:$0xf]
          %v2188 = vld [vmem:[#allocation9 + $0xd0] sm:$0xf]
          %v2189 = vld [vmem:[#allocation9 + $0xd4] sm:$0xf]
          %v2190 = vld [vmem:[#allocation9 + $0xd8] sm:$0xf]
          %v2191 = vld [vmem:[#allocation9 + $0xdc] sm:$0xf]
          %v2192 = vld [vmem:[#allocation9 + $0xe0] sm:$0xf]
          %v2193 = vld [vmem:[#allocation9 + $0xe4] sm:$0xf]
          %v2194 = vld [vmem:[#allocation9 + $0xe8] sm:$0xf]
          %v2195 = vld [vmem:[#allocation9 + $0xec] sm:$0xf]
          %v2196 = vld [vmem:[#allocation9 + $0xf0] sm:$0xf]
          %v2197 = vld [vmem:[#allocation9 + $0xf4] sm:$0xf]
          %v2198 = vld [vmem:[#allocation9 + $0xf8] sm:$0xf]
          %v2199 = vld [vmem:[#allocation9 + $0xfc] sm:$0xf]
          %v2200 = vld [vmem:[#allocation9 + $0x100] sm:$0xf]
          %v2201 = vld [vmem:[#allocation9 + $0x104] sm:$0xf]
          %v2202 = vld [vmem:[#allocation9 + $0x108] sm:$0xf]
          %v2203 = vld [vmem:[#allocation9 + $0x10c] sm:$0xf]
          %v2204 = vld [vmem:[#allocation9 + $0x110] sm:$0xf]
          %v2205 = vld [vmem:[#allocation9 + $0x114] sm:$0xf]
          %v2206 = vld [vmem:[#allocation9 + $0x118] sm:$0xf]
          %v2207 = vld [vmem:[#allocation9 + $0x11c] sm:$0xf]
          %v2208 = vld [vmem:[#allocation9 + $0x120] sm:$0xf]
          %v2209 = vld [vmem:[#allocation9 + $0x124] sm:$0xf]
          %v2210 = vld [vmem:[#allocation9 + $0x128] sm:$0xf]
          %v2211 = vld [vmem:[#allocation9 + $0x12c] sm:$0xf]
          %v2212 = vld [vmem:[#allocation9 + $0x130] sm:$0xf]
          %v2213 = vld [vmem:[#allocation9 + $0x134] sm:$0xf]
          %v2214 = vld [vmem:[#allocation9 + $0x138] sm:$0xf]
          %v2215 = vld [vmem:[#allocation9 + $0x13c] sm:$0xf]
          %v2216 = vld [vmem:[#allocation9 + $0x140] sm:$0xf]
          %v2217 = vld [vmem:[#allocation9 + $0x144] sm:$0xf]
          %v2218 = vld [vmem:[#allocation9 + $0x148] sm:$0xf]
          %v2219 = vld [vmem:[#allocation9 + $0x14c] sm:$0xf]
          %v2220 = vld [vmem:[#allocation9 + $0x150] sm:$0xf]
          %v2221 = vld [vmem:[#allocation9 + $0x154] sm:$0xf]
          %v2222 = vld [vmem:[#allocation9 + $0x158] sm:$0xf]
          %v2223 = vld [vmem:[#allocation9 + $0x15c] sm:$0xf]
          %v2224 = vld [vmem:[#allocation9 + $0x160] sm:$0xf]
          %v2225 = vld [vmem:[#allocation9 + $0x164] sm:$0xf]
          %v2226 = vld [vmem:[#allocation9 + $0x168] sm:$0xf]
          %v2227 = vld [vmem:[#allocation9 + $0x16c] sm:$0xf]
          %v2228 = vld [vmem:[#allocation9 + $0x170] sm:$0xf]
          %v2229 = vld [vmem:[#allocation9 + $0x174] sm:$0xf]
          %v2230 = vld [vmem:[#allocation9 + $0x178] sm:$0xf]
          %v2231 = vld [vmem:[#allocation9 + $0x17c] sm:$0xf]
          %v2232 = vld [vmem:[#allocation11] sm:$0x1]
          %v2234 = vlaneseq
          %v2235 = vshrl.u32 %v2234, 7
          %v2236 = vsub.s32 0, %v2235
          %v2237 = vrot.slane %v2232, %v2236
          %v2335 = vunpack.c.l.b16 %v2136
          %v2336 = vunpack.c.l.b16 %v2137
          %v2337 = vunpack.c.l.b16 %v2138
          %v2338 = vunpack.c.l.b16 %v2139
          %v2339 = vunpack.c.l.b16 %v2140
          %v2340 = vunpack.c.l.b16 %v2141
          %v2341 = vunpack.c.l.b16 %v2142
          %v2342 = vunpack.c.l.b16 %v2143
          %v2343 = vunpack.c.l.b16 %v2144
          %v2344 = vunpack.c.l.b16 %v2145
          %v2345 = vunpack.c.l.b16 %v2146
          %v2346 = vunpack.c.l.b16 %v2147
          %v2347 = vunpack.c.l.b16 %v2148
          %v2348 = vunpack.c.l.b16 %v2149
          %v2349 = vunpack.c.l.b16 %v2150
          %v2350 = vunpack.c.l.b16 %v2151
          %v2351 = vunpack.c.l.b16 %v2152
          %v2352 = vunpack.c.l.b16 %v2153
          %v2353 = vunpack.c.l.b16 %v2154
          %v2354 = vunpack.c.l.b16 %v2155
          %v2355 = vunpack.c.l.b16 %v2156
          %v2356 = vunpack.c.l.b16 %v2157
          %v2357 = vunpack.c.l.b16 %v2158
          %v2358 = vunpack.c.l.b16 %v2159
          %v2359 = vunpack.c.l.b16 %v2160
          %v2360 = vunpack.c.l.b16 %v2161
          %v2361 = vunpack.c.l.b16 %v2162
          %v2362 = vunpack.c.l.b16 %v2163
          %v2363 = vunpack.c.l.b16 %v2164
          %v2364 = vunpack.c.l.b16 %v2165
          %v2365 = vunpack.c.l.b16 %v2166
          %v2366 = vunpack.c.l.b16 %v2167
          %v2367 = vunpack.c.l.b16 %v2168
          %v2368 = vunpack.c.l.b16 %v2169
          %v2369 = vunpack.c.l.b16 %v2170
          %v2370 = vunpack.c.l.b16 %v2171
          %v2371 = vunpack.c.l.b16 %v2172
          %v2372 = vunpack.c.l.b16 %v2173
          %v2373 = vunpack.c.l.b16 %v2174
          %v2374 = vunpack.c.l.b16 %v2175
          %v2375 = vunpack.c.l.b16 %v2176
          %v2376 = vunpack.c.l.b16 %v2177
          %v2377 = vunpack.c.l.b16 %v2178
          %v2378 = vunpack.c.l.b16 %v2179
          %v2379 = vunpack.c.l.b16 %v2180
          %v2380 = vunpack.c.l.b16 %v2181
          %v2381 = vunpack.c.l.b16 %v2182
          %v2382 = vunpack.c.l.b16 %v2183
          %v2383 = vunpack.c.l.b16 %v2184
          %v2384 = vunpack.c.l.b16 %v2185
          %v2385 = vunpack.c.l.b16 %v2186
          %v2386 = vunpack.c.l.b16 %v2187
          %v2387 = vunpack.c.l.b16 %v2188
          %v2388 = vunpack.c.l.b16 %v2189
          %v2389 = vunpack.c.l.b16 %v2190
          %v2390 = vunpack.c.l.b16 %v2191
          %v2391 = vunpack.c.l.b16 %v2192
          %v2392 = vunpack.c.l.b16 %v2193
          %v2393 = vunpack.c.l.b16 %v2194
          %v2394 = vunpack.c.l.b16 %v2195
          %v2395 = vunpack.c.l.b16 %v2196
          %v2396 = vunpack.c.l.b16 %v2197
          %v2397 = vunpack.c.l.b16 %v2198
          %v2398 = vunpack.c.l.b16 %v2199
          %v2399 = vunpack.c.l.b16 %v2200
          %v2400 = vunpack.c.l.b16 %v2201
          %v2401 = vunpack.c.l.b16 %v2202
          %v2402 = vunpack.c.l.b16 %v2203
          %v2403 = vunpack.c.l.b16 %v2204
          %v2404 = vunpack.c.l.b16 %v2205
          %v2405 = vunpack.c.l.b16 %v2206
          %v2406 = vunpack.c.l.b16 %v2207
          %v2407 = vunpack.c.l.b16 %v2208
          %v2408 = vunpack.c.l.b16 %v2209
          %v2409 = vunpack.c.l.b16 %v2210
          %v2410 = vunpack.c.l.b16 %v2211
          %v2411 = vunpack.c.l.b16 %v2212
          %v2412 = vunpack.c.l.b16 %v2213
          %v2413 = vunpack.c.l.b16 %v2214
          %v2414 = vunpack.c.l.b16 %v2215
          %v2415 = vunpack.c.l.b16 %v2216
          %v2416 = vunpack.c.l.b16 %v2217
          %v2417 = vunpack.c.l.b16 %v2218
          %v2418 = vunpack.c.l.b16 %v2219
          %v2419 = vunpack.c.l.b16 %v2220
          %v2420 = vunpack.c.l.b16 %v2221
          %v2421 = vunpack.c.l.b16 %v2222
          %v2422 = vunpack.c.l.b16 %v2223
          %v2423 = vunpack.c.l.b16 %v2224
          %v2424 = vunpack.c.l.b16 %v2225
          %v2425 = vunpack.c.l.b16 %v2226
          %v2426 = vunpack.c.l.b16 %v2227
          %v2427 = vunpack.c.l.b16 %v2228
          %v2428 = vunpack.c.l.b16 %v2229
          %v2429 = vunpack.c.l.b16 %v2230
          %v2430 = vunpack.c.l.b16 %v2231
          %v2431 = vpack.c.b16 %v2336, %v2335
          %v2432 = vpack.c.b16 %v2338, %v2337
          %v2433 = vpack.c.b16 %v2340, %v2339
          %v2434 = vpack.c.b16 %v2342, %v2341
          %v2435 = vpack.c.b16 %v2344, %v2343
          %v2436 = vpack.c.b16 %v2346, %v2345
          %v2437 = vpack.c.b16 %v2348, %v2347
          %v2438 = vpack.c.b16 %v2350, %v2349
          %v2439 = vpack.c.b16 %v2352, %v2351
          %v2440 = vpack.c.b16 %v2354, %v2353
          %v2441 = vpack.c.b16 %v2356, %v2355
          %v2442 = vpack.c.b16 %v2358, %v2357
          %v2443 = vpack.c.b16 %v2360, %v2359
          %v2444 = vpack.c.b16 %v2362, %v2361
          %v2445 = vpack.c.b16 %v2364, %v2363
          %v2446 = vpack.c.b16 %v2366, %v2365
          %v2447 = vpack.c.b16 %v2368, %v2367
          %v2448 = vpack.c.b16 %v2370, %v2369
          %v2449 = vpack.c.b16 %v2372, %v2371
          %v2450 = vpack.c.b16 %v2374, %v2373
          %v2451 = vpack.c.b16 %v2376, %v2375
          %v2452 = vpack.c.b16 %v2378, %v2377
          %v2453 = vpack.c.b16 %v2380, %v2379
          %v2454 = vpack.c.b16 %v2382, %v2381
          %v2455 = vpack.c.b16 %v2384, %v2383
          %v2456 = vpack.c.b16 %v2386, %v2385
          %v2457 = vpack.c.b16 %v2388, %v2387
          %v2458 = vpack.c.b16 %v2390, %v2389
          %v2459 = vpack.c.b16 %v2392, %v2391
          %v2460 = vpack.c.b16 %v2394, %v2393
          %v2461 = vpack.c.b16 %v2396, %v2395
          %v2462 = vpack.c.b16 %v2398, %v2397
          %v2463 = vpack.c.b16 %v2400, %v2399
          %v2464 = vpack.c.b16 %v2402, %v2401
          %v2465 = vpack.c.b16 %v2404, %v2403
          %v2466 = vpack.c.b16 %v2406, %v2405
          %v2467 = vpack.c.b16 %v2408, %v2407
          %v2468 = vpack.c.b16 %v2410, %v2409
          %v2469 = vpack.c.b16 %v2412, %v2411
          %v2470 = vpack.c.b16 %v2414, %v2413
          %v2471 = vpack.c.b16 %v2416, %v2415
          %v2472 = vpack.c.b16 %v2418, %v2417
          %v2473 = vpack.c.b16 %v2420, %v2419
          %v2474 = vpack.c.b16 %v2422, %v2421
          %v2475 = vpack.c.b16 %v2424, %v2423
          %v2476 = vpack.c.b16 %v2426, %v2425
          %v2477 = vpack.c.b16 %v2428, %v2427
          %v2478 = vpack.c.b16 %v2430, %v2429
          %2527 = vmatprep.subr.bf16.mxu0 0
          %2528 = vmatpush1.bf16.msra.mxu0 %v2438
          %2529 = vmatprep.subr.bf16.mxu0 0
          %2530 = vmatpush1.bf16.msra.mxu0 %v2437
          %2531 = vmatprep.subr.bf16.mxu0 0
          %2532 = vmatpush1.bf16.msra.mxu0 %v2436
          %2533 = vmatprep.subr.bf16.mxu0 0
          %2534 = vmatpush1.bf16.msra.mxu0 %v2435
          %2535 = vmatprep.subr.bf16.mxu0 0
          %2536 = vmatpush1.bf16.msra.mxu0 %v2434
          %2537 = vmatprep.subr.bf16.mxu0 0
          %2538 = vmatpush1.bf16.msra.mxu0 %v2433
          %2539 = vmatprep.subr.bf16.mxu0 0
          %2540 = vmatpush1.bf16.msra.mxu0 %v2432
          %2541 = vmatprep.subr.bf16.mxu0 0
          %2542 = vmatpush1.bf16.msra.mxu0 %v2431
          %2543 = vmatprep.subr.bf16.mxu0 0
          %2544 = vmatpush2.bf16.msra.mxu0 %v2446
          %2545 = vmatprep.subr.bf16.mxu0 0
          %2546 = vmatpush2.bf16.msra.mxu0 %v2445
          %2547 = vmatprep.subr.bf16.mxu0 0
          %2548 = vmatpush2.bf16.msra.mxu0 %v2444
          %2549 = vmatprep.subr.bf16.mxu0 0
          %2550 = vmatpush2.bf16.msra.mxu0 %v2443
          %2551 = vmatprep.subr.bf16.mxu0 0
          %2552 = vmatpush2.bf16.msra.mxu0 %v2442
          %2553 = vmatprep.subr.bf16.mxu0 0
          %2554 = vmatpush2.bf16.msra.mxu0 %v2441
          %2555 = vmatprep.subr.bf16.mxu0 0
          %2556 = vmatpush2.bf16.msra.mxu0 %v2440
          %2557 = vmatprep.subr.bf16.mxu0 0
          %2558 = vmatpush2.bf16.msra.mxu0 %v2439
          %2559 = vmatprep.mubr.bf16.mxu0 %v2131
          %2560 = vmatmul.mubr.bf16.gmra.mxu0 %v2130
          %v2561 = vpop.f32.mrf.mxu0
          %v2562 = vadd.f32 %v2237, %v2561
          %v2563 = vpop.f32.mrf.mxu0
          %v2564 = vpop.f32.mrf.mxu0
          %v2565 = vpop.f32.mrf.mxu0
          %2566 = vdwg.mxu0
          %2567 = vmatprep.subr.bf16.mxu0 0
          %2568 = vmatpush1.bf16.msra.mxu0 %v2454
          %2569 = vmatprep.subr.bf16.mxu0 0
          %2570 = vmatpush1.bf16.msra.mxu0 %v2453
          %2571 = vmatprep.subr.bf16.mxu0 0
          %2572 = vmatpush1.bf16.msra.mxu0 %v2452
          %2573 = vmatprep.subr.bf16.mxu0 0
          %2574 = vmatpush1.bf16.msra.mxu0 %v2451
          %2575 = vmatprep.subr.bf16.mxu0 0
          %2576 = vmatpush1.bf16.msra.mxu0 %v2450
          %2577 = vmatprep.subr.bf16.mxu0 0
          %2578 = vmatpush1.bf16.msra.mxu0 %v2449
          %2579 = vmatprep.subr.bf16.mxu0 0
          %2580 = vmatpush1.bf16.msra.mxu0 %v2448
          %2581 = vmatprep.subr.bf16.mxu0 0
          %2582 = vmatpush1.bf16.msra.mxu0 %v2447
          %2583 = vmatprep.subr.bf16.mxu0 0
          %2584 = vmatpush2.bf16.msra.mxu0 %v2462
          %2585 = vmatprep.subr.bf16.mxu0 0
          %2586 = vmatpush2.bf16.msra.mxu0 %v2461
          %2587 = vmatprep.subr.bf16.mxu0 0
          %2588 = vmatpush2.bf16.msra.mxu0 %v2460
          %2589 = vmatprep.subr.bf16.mxu0 0
          %2590 = vmatpush2.bf16.msra.mxu0 %v2459
          %2591 = vmatprep.subr.bf16.mxu0 0
          %2592 = vmatpush2.bf16.msra.mxu0 %v2458
          %2593 = vmatprep.subr.bf16.mxu0 0
          %2594 = vmatpush2.bf16.msra.mxu0 %v2457
          %2595 = vmatprep.subr.bf16.mxu0 0
          %2596 = vmatpush2.bf16.msra.mxu0 %v2456
          %2597 = vmatprep.subr.bf16.mxu0 0
          %2598 = vmatpush2.bf16.msra.mxu0 %v2455
          %2599 = vmatprep.mubr.bf16.mxu0 %v2133
          %2600 = vmatmul.mubr.bf16.gmra.mxu0 %v2132
          %v2601 = vpop.f32.mrf.mxu0
          %v2602 = vadd.f32 %v2562, %v2601
          %v2603 = vpop.f32.mrf.mxu0
          %v2604 = vpop.f32.mrf.mxu0
          %v2605 = vpop.f32.mrf.mxu0
          %2606 = vdwg.mxu0
          %2607 = vmatprep.subr.bf16.mxu0 0
          %2608 = vmatpush1.bf16.msra.mxu0 %v2470
          %2609 = vmatprep.subr.bf16.mxu0 0
          %2610 = vmatpush1.bf16.msra.mxu0 %v2469
          %2611 = vmatprep.subr.bf16.mxu0 0
          %2612 = vmatpush1.bf16.msra.mxu0 %v2468
          %2613 = vmatprep.subr.bf16.mxu0 0
          %2614 = vmatpush1.bf16.msra.mxu0 %v2467
          %2615 = vmatprep.subr.bf16.mxu0 0
          %2616 = vmatpush1.bf16.msra.mxu0 %v2466
          %2617 = vmatprep.subr.bf16.mxu0 0
          %2618 = vmatpush1.bf16.msra.mxu0 %v2465
          %2619 = vmatprep.subr.bf16.mxu0 0
          %2620 = vmatpush1.bf16.msra.mxu0 %v2464
          %2621 = vmatprep.subr.bf16.mxu0 0
          %2622 = vmatpush1.bf16.msra.mxu0 %v2463
          %2623 = vmatprep.subr.bf16.mxu0 0
          %2624 = vmatpush2.bf16.msra.mxu0 %v2478
          %2625 = vmatprep.subr.bf16.mxu0 0
          %2626 = vmatpush2.bf16.msra.mxu0 %v2477
          %2627 = vmatprep.subr.bf16.mxu0 0
          %2628 = vmatpush2.bf16.msra.mxu0 %v2476
          %2629 = vmatprep.subr.bf16.mxu0 0
          %2630 = vmatpush2.bf16.msra.mxu0 %v2475
          %2631 = vmatprep.subr.bf16.mxu0 0
          %2632 = vmatpush2.bf16.msra.mxu0 %v2474
          %2633 = vmatprep.subr.bf16.mxu0 0
          %2634 = vmatpush2.bf16.msra.mxu0 %v2473
          %2635 = vmatprep.subr.bf16.mxu0 0
          %2636 = vmatpush2.bf16.msra.mxu0 %v2472
          %2637 = vmatprep.subr.bf16.mxu0 0
          %2638 = vmatpush2.bf16.msra.mxu0 %v2471
          %2639 = vmatprep.mubr.bf16.mxu0 %v2135
          %2640 = vmatmul.mubr.bf16.gmra.mxu0 %v2134
          %v2641 = vpop.f32.mrf.mxu0
          %v2642 = vadd.f32 %v2602, %v2641
          %v2643 = vpop.f32.mrf.mxu0
          %v2644 = vpop.f32.mrf.mxu0
          %v2645 = vpop.f32.mrf.mxu0
          %2646 = vdwg.mxu0
          %2647 = vst [vmem:[#allocation12] sm:$0xff] %v2642
          %v2648 = vlaneseq
          %v2649 = vand.u32 %v2648, 127
          %vm2650 = vcmp.lt.s32.totalorder %v2649, 10
          %v2651 = vsel %vm2650, %v2642, -inf
          %2652 = vmax.xlane.f32.xlu0 %v2651
          %v2653 = vpop.xlane.xlu0 %2652
          %vm2654 = vcmp.eq.f32.partialorder %v2651, %v2653
          %v2655 = vsel %vm2654, %v2649, 128
          %v2656 = vcvt.s32.f32 %v2655
          %2657 = vmin.xlane.f32.xlu0 %v2656
          %v2658 = vpop.xlane.xlu0 %2657
          %v2659 = vcvt.f32.s32.to.zero.pseudo %v2658
          %vm2660 = vcmask 7168
          %2661 = vst.msk [vmem:[%s7] sm:$0xff] %vm2660, %v2659
        $region72: #{mlp_forward.1} parent=43 // pred_fallthru
          _
        // Predicated region
        $region73: #{mlp_forward.1} parent=43 // pred_check
          %p2662 = pneg %p174
        $region74: #{mlp_forward.1} parent=43 // pred_check_branch
          %2664 = sbr.rel (%p2662) target = $region76
        $region75: #{mlp_forward.1} parent=43 // pred_region
          %s2666 = ssub.s32 128, 128
          %2667 = vsyncadd [#allocation5], %s2666
          %s2669 = sshll.u32 [#allocation12], 4
          %s2670 = int_to_ptr.vmem [resolvable:$true] %s2669
          %2672 = dma.vmem_to_hbm [thread:$0]  %s2670, 128, %s6, [#allocation5]
        $region76: #{mlp_forward.1} parent=43 // pred_fallthru
          _
        // Predicated region
        $region77: #{mlp_forward.1} parent=43 // pred_check
          %p2673 = pneg %p195
        $region78: #{mlp_forward.1} parent=43 // pred_check_branch
          %2675 = sbr.rel (%p2673) target = $region80
        $region79: #{mlp_forward.1} parent=43 // pred_region
          _
        $region80: #{mlp_forward.1} parent=43 // pred_fallthru
          _
        // Predicated region
        $region81: #{mlp_forward.1} parent=43 // pred_check
          %p2676 = pneg %p174
        $region82: #{mlp_forward.1} parent=43 // pred_check_branch
          %2678 = sbr.rel (%p2676) target = $region84
        $region83: #{mlp_forward.1} parent=43 // pred_region
          %2679 = dma.done [#allocation5], 128
        $region84: #{mlp_forward.1} parent=43 // pred_fallthru
          _
        // Predicated region
        $region85: #{mlp_forward.1} parent=43 // pred_check
          %p2680 = pneg %p195
        $region86: #{mlp_forward.1} parent=43 // pred_check_branch
          %2682 = sbr.rel (%p2680) target = $region88
        $region87: #{mlp_forward.1} parent=43 // pred_region
          _
        $region88: #{mlp_forward.1} parent=43 // pred_fallthru
          _
      $region44: #{mlp_forward.1} parent=5 // pred_fallthru
        _
      %p2683 = scmp.le.s32.totalorder 2, %s20
      // Predicated region
      $region89: #{mlp_forward.1} parent=5 // pred_check
        %p2684 = pneg %p2683
      $region90: #{mlp_forward.1} parent=5 // pred_check_branch
        %2686 = sbr.rel (%p2684) target = $region92
      $region91: #{mlp_forward.1} parent=5 // pred_region
        %s2687 = ssub.s32 %s20, 2
      $region92: #{mlp_forward.1} parent=5 // pred_fallthru
        _
    $region6: #{mlp_forward.1} parent=1 // loop_footer
      %s24 = sadd.s32 1, %s20
    $region7: #{mlp_forward.1} parent=1 // loop_footer_branch
      %19 = sbr.rel target = $region3
    $region8: #{mlp_forward.1} parent=1 // loop_exit
      _
    %2688 = vsyncpa [#allocation4], 1
    %s2689 = scalar_lea.sflag [#allocation4], 1
    %2690 = vsyncpa %s2689, 1
    %2691 = vsyncpa [#allocation7], 1
    %2692 = vsyncpa [#allocation10], 1
    %2693 = vsyncpa [#allocation5], 1
    %s2694 = scalar_lea.sflag [#allocation5], 1
    %2695 = vsyncpa %s2694, 1

</llo_original>
